<compile_context>
chip_gen: v7x
topology: tpu7x:2x2x1
jax: 0.10.0
libtpu: 0.0.40
codegen_flags: <defaults>
</compile_context>

<pallas_src>
import functools

import jax
import jax.numpy as jnp
from jax.experimental import pallas as pl
from jax.experimental.pallas import tpu as pltpu


# ----------------------------------------------------------------------------
# Block-size selection helpers
# ----------------------------------------------------------------------------
def _pick_time_block(T):
    # Whole sequence in one block when it can't be tiled by 8 (full-dim escape
    # from the (8,128) rule); otherwise the largest multiple of 8 (<=32) that
    # divides T, to amortize ~0.35 us per grid step.
    if T % 8 != 0:
        return T
    for cand in (32, 16, 8):
        if T % cand == 0:
            return cand
    return T


def _pick_vocab_block(V):
    # Full-array block for small / non-128-multiple vocabularies; otherwise a
    # lane-dense tile so production-size (H, V) weights stream through VMEM.
    if V % 128 != 0:
        return V
    for cand in (1024, 512, 256, 128):
        if V % cand == 0:
            return cand
    return V


# ----------------------------------------------------------------------------
# Fused LSTM + output-projection kernel.
# Grid = (T // tt, V // tv); time axis outer (sequential recurrence), vocab
# axis inner.  Gate order follows PyTorch nn.LSTM: i, f, g, o.
# ----------------------------------------------------------------------------
def _fused_lstm_lm_kernel(x_ref, h0_ref, c0_ref, wcat_ref, b_ref,
                          wout_ref, bout_ref,
                          logits_ref, hn_ref, cn_ref,
                          h_sc, c_sc, hblk_sc,
                          *, tt, hidden, compute_dtype):
    t = pl.program_id(0)
    v = pl.program_id(1)
    H = hidden
    B = h_sc.shape[0]

    @pl.when((t == 0) & (v == 0))
    def _init():
        h_sc[...] = h0_ref[...]
        c_sc[...] = c0_ref[...]

    # Recurrence over this time block: only once per time block (v == 0);
    # the resulting hidden block stays in VMEM scratch for all vocab tiles.
    @pl.when(v == 0)
    def _recurrence():
        wcat = wcat_ref[...].astype(compute_dtype)      # (E+H, 4H)
        bias = b_ref[...]                               # (1, 4H)
        h = h_sc[...]                                   # (B, H)
        c = c_sc[...]                                   # (B, H)
        for s in range(tt):                             # static unroll (tt <= 32)
            x_t = x_ref[:, s, :]                        # (B, E), batch-first block
            xh = jnp.concatenate([x_t, h], axis=-1).astype(compute_dtype)
            gates = jnp.dot(xh, wcat,
                            preferred_element_type=jnp.float32) + bias
            i = jax.nn.sigmoid(gates[:, 0 * H:1 * H])
            f = jax.nn.sigmoid(gates[:, 1 * H:2 * H])
            g = jnp.tanh(gates[:, 2 * H:3 * H])
            o = jax.nn.sigmoid(gates[:, 3 * H:4 * H])
            c = f * c + i * g
            h = o * jnp.tanh(c)
            hblk_sc[:, s, :] = h
        h_sc[...] = h
        c_sc[...] = c

    # Output projection for this vocab tile (every v); hidden block never
    # leaves VMEM.  Per-batch 2D matmuls keep everything MXU-friendly and
    # avoid in-kernel reshapes/transposes (B is small and static).
    wout = wout_ref[...].astype(compute_dtype)          # (H, tv)
    bout = bout_ref[...]                                # (1, tv)
    for b in range(B):
        hb = hblk_sc[b].astype(compute_dtype)           # (tt, H)
        logits_ref[b] = (jnp.dot(hb, wout, preferred_element_type=jnp.float32)
                         + bout).astype(logits_ref.dtype)

    # Final hidden/cell state: store once, on the last time block only.
    @pl.when((t == pl.num_programs(0) - 1) & (v == 0))
    def _finalize():
        hn_ref[...] = h_sc[...]
        cn_ref[...] = c_sc[...]


def lstm_lm_forward(x_bte, h0, c0, w_cat, b_lstm, w_out, b_out,
                    *, compute_dtype=jnp.float32):
    """x_bte: (B, T, E) f32 batch-first; returns (logits (B,T,V), h_n, c_n)."""
    B, T, E = x_bte.shape
    H = h0.shape[-1]
    V = w_out.shape[-1]
    tt = _pick_time_block(T)
    tv = _pick_vocab_block(V)

    kernel = functools.partial(_fused_lstm_lm_kernel, tt=tt, hidden=H,
                               compute_dtype=compute_dtype)

    logits, h_n, c_n = pl.pallas_call(
        kernel,
        out_shape=(
            jax.ShapeDtypeStruct((B, T, V), jnp.float32),
            jax.ShapeDtypeStruct((B, H), jnp.float32),
            jax.ShapeDtypeStruct((B, H), jnp.float32),
        ),
        grid_spec=pltpu.PrefetchScalarGridSpec(
            num_scalar_prefetch=0,
            grid=(T // tt, V // tv),
            in_specs=[
                pl.BlockSpec((B, tt, E), lambda t, v: (0, t, 0)),    # x (batch-first)
                pl.BlockSpec((B, H), lambda t, v: (0, 0)),           # h0
                pl.BlockSpec((B, H), lambda t, v: (0, 0)),           # c0
                pl.BlockSpec((E + H, 4 * H), lambda t, v: (0, 0)),   # [W_ih; W_hh]
                pl.BlockSpec((1, 4 * H), lambda t, v: (0, 0)),       # b_ih + b_hh
                pl.BlockSpec((H, tv), lambda t, v: (0, v)),          # W_out tile
                pl.BlockSpec((1, tv), lambda t, v: (0, v)),          # b_out tile
            ],
            out_specs=[
                pl.BlockSpec((B, tt, tv), lambda t, v: (0, t, v)),   # logits
                pl.BlockSpec((B, H), lambda t, v: (0, 0)),           # h_n
                pl.BlockSpec((B, H), lambda t, v: (0, 0)),           # c_n
            ],
            scratch_shapes=[
                pltpu.VMEM((B, H), jnp.float32),                     # running h
                pltpu.VMEM((B, H), jnp.float32),                     # running c
                pltpu.VMEM((B, tt, H), jnp.float32),                 # hidden block
            ],
        ),
        compiler_params=pltpu.CompilerParams(
            # Both axes sequential: the time axis is a recurrence and the vocab
            # axis reuses the hidden block computed at v == 0.
            dimension_semantics=("arbitrary", "arbitrary")),
    )(x_bte, h0, c0, w_cat, b_lstm, w_out, b_out)
    return logits, h_n, c_n


# ----------------------------------------------------------------------------
# Model wrapper equivalent to the PyTorch Model.forward (num_layers = 1)
# ----------------------------------------------------------------------------
def init_params(key, vocab_size, emb_size, hidden_size):
    ks = jax.random.split(key, 7)
    scale = 1.0 / jnp.sqrt(hidden_size)
    emb = jax.random.normal(ks[0], (vocab_size, emb_size), jnp.float32)
    # Stored pre-transposed: (E, 4H) / (H, 4H), PyTorch gate order i, f, g, o.
    w_ih = jax.random.uniform(ks[1], (emb_size, 4 * hidden_size),
                              jnp.float32, -scale, scale)
    w_hh = jax.random.uniform(ks[2], (hidden_size, 4 * hidden_size),
                              jnp.float32, -scale, scale)
    b_ih = jax.random.uniform(ks[3], (1, 4 * hidden_size),
                              jnp.float32, -scale, scale)
    b_hh = jax.random.uniform(ks[4], (1, 4 * hidden_size),
                              jnp.float32, -scale, scale)
    w_out = jax.random.uniform(ks[5], (hidden_size, vocab_size),
                               jnp.float32, -scale, scale)
    b_out = jax.random.uniform(ks[6], (1, vocab_size),
                               jnp.float32, -scale, scale)
    return {
        "emb": emb,
        "w_cat": jnp.concatenate([w_ih, w_hh], axis=0),  # (E+H, 4H), fused gates
        "b_lstm": b_ih + b_hh,                           # combined LSTM bias
        "w_out": w_out,
        "b_out": b_out,
    }


@jax.jit
def model_forward(params, x_ids, hx=None):
    """x_ids: (B, T) int32 token ids.  Returns (logits (B,T,V), (h_n, c_n))."""
    B, T = x_ids.shape
    H = params["w_cat"].shape[1] // 4

    # Embedding lookup (glue: plain JAX gather).  Stays batch-first.
    emb = jnp.take(params["emb"], x_ids, axis=0).astype(jnp.float32)  # (B, T, E)

    if hx is None:
        h0 = jnp.zeros((B, H), jnp.float32)
        c0 = jnp.zeros((B, H), jnp.float32)
    else:
        h0 = hx[0][0].astype(jnp.float32)   # (num_layers=1, B, H) -> (B, H)
        c0 = hx[1][0].astype(jnp.float32)

    # TODO(synk): on v6e/v7x pass compute_dtype=jnp.bfloat16 (and bf16 weights)
    # to feed the MXU bf16 operands; kept f32 here for exact PyTorch parity.
    logits, h_n, c_n = lstm_lm_forward(emb, h0, c0, params["w_cat"],
                                       params["b_lstm"], params["w_out"],
                                       params["b_out"])

    # match PyTorch: (num_layers, B, H)
    return logits, (h_n[None, ...], c_n[None, ...])


if __name__ == "__main__":
    vocab_size, emb_size, hidden_size = 32, 32, 32
    batch, seq = 2, 8

    key = jax.random.PRNGKey(0)
    k_params, k_x = jax.random.split(key)
    params = init_params(k_params, vocab_size, emb_size, hidden_size)
    x_ids = jax.random.randint(k_x, (batch, seq), 0, vocab_size, dtype=jnp.int32)

    logits, (h_n, c_n) = model_forward(params, x_ids)
    jax.block_until_ready((logits, h_n, c_n))

    assert logits.shape == (batch, seq, vocab_size)
    assert h_n.shape == (1, batch, hidden_size)
    assert c_n.shape == (1, batch, hidden_size)
    print("KERNEL_OK")
</pallas_src>

<mosaic_0001>
module attributes {stable_mosaic.version = 11 : i64} {
  func.func @_fused_lstm_lm_kernel(%arg0: i32, %arg1: i32, %arg2: memref<2x8x32xf32, #tpu.memory_space<vmem>>, %arg3: memref<2x32xf32, #tpu.memory_space<vmem>>, %arg4: memref<2x32xf32, #tpu.memory_space<vmem>>, %arg5: memref<64x128xf32, #tpu.memory_space<vmem>>, %arg6: memref<1x128xf32, #tpu.memory_space<vmem>>, %arg7: memref<32x32xf32, #tpu.memory_space<vmem>>, %arg8: memref<1x32xf32, #tpu.memory_space<vmem>>, %arg9: memref<2x8x32xf32, #tpu.memory_space<vmem>>, %arg10: memref<2x32xf32, #tpu.memory_space<vmem>>, %arg11: memref<2x32xf32, #tpu.memory_space<vmem>>, %arg12: memref<2x32xf32, #tpu.memory_space<vmem>>, %arg13: memref<2x32xf32, #tpu.memory_space<vmem>>, %arg14: memref<2x8x32xf32, #tpu.memory_space<vmem>>) attributes {dimension_semantics = [#tpu.dimension_semantics<arbitrary>, #tpu.dimension_semantics<arbitrary>], iteration_bounds = array<i64: 1, 1>, scalar_prefetch = 0 : i64, scratch_operands = 3 : i64, tpu.core_type = #tpu.core_type<tc>, window_params = [{transform_indices = @transform_0, window_bounds = array<i64: 2, 8, 32>}, {pipeline_mode = #tpu.pipeline_mode<synchronous>, transform_indices = @transform_1, window_bounds = array<i64: 2, 32>}, {pipeline_mode = #tpu.pipeline_mode<synchronous>, transform_indices = @transform_2, window_bounds = array<i64: 2, 32>}, {pipeline_mode = #tpu.pipeline_mode<synchronous>, transform_indices = @transform_3, window_bounds = array<i64: 64, 128>}, {pipeline_mode = #tpu.pipeline_mode<synchronous>, transform_indices = @transform_4, window_bounds = array<i64: 1, 128>}, {transform_indices = @transform_5, window_bounds = array<i64: 32, 32>}, {transform_indices = @transform_6, window_bounds = array<i64: 1, 32>}, {transform_indices = @transform_7, window_bounds = array<i64: 2, 8, 32>}, {pipeline_mode = #tpu.pipeline_mode<synchronous>, transform_indices = @transform_8, window_bounds = array<i64: 2, 32>}, {pipeline_mode = #tpu.pipeline_mode<synchronous>, transform_indices = @transform_9, window_bounds = array<i64: 2, 32>}]} {
    %c0_i32 = arith.constant 0 : i32
    %0 = arith.cmpi eq, %arg0, %c0_i32 : i32
    %c0_i32_0 = arith.constant 0 : i32
    %1 = arith.cmpi eq, %arg1, %c0_i32_0 : i32
    %2 = arith.andi %0, %1 : i1
    %3 = arith.extui %2 : i1 to i32
    %c0_i32_1 = arith.constant 0 : i32
    %4 = arith.cmpi ne, %3, %c0_i32_1 : i32
    scf.if %4 {
      %c0_22 = arith.constant 0 : index
      %c0_23 = arith.constant 0 : index
      %31 = vector.load %arg3[%c0_22, %c0_23] : memref<2x32xf32, #tpu.memory_space<vmem>>, vector<2x32xf32>
      %c0_24 = arith.constant 0 : index
      %c0_25 = arith.constant 0 : index
      %32 = vector.load %arg12[%c0_24, %c0_25] : memref<2x32xf32, #tpu.memory_space<vmem>>, vector<2x32xf32>
      tpu.vector_store %arg12[%c0_24, %c0_25], %31 {strides = array<i32>} : memref<2x32xf32, #tpu.memory_space<vmem>>, vector<2x32xf32>,
      %c0_26 = arith.constant 0 : index
      %c0_27 = arith.constant 0 : index
      %33 = vector.load %arg4[%c0_26, %c0_27] : memref<2x32xf32, #tpu.memory_space<vmem>>, vector<2x32xf32>
      %c0_28 = arith.constant 0 : index
      %c0_29 = arith.constant 0 : index
      %34 = vector.load %arg13[%c0_28, %c0_29] : memref<2x32xf32, #tpu.memory_space<vmem>>, vector<2x32xf32>
      tpu.vector_store %arg13[%c0_28, %c0_29], %33 {strides = array<i32>} : memref<2x32xf32, #tpu.memory_space<vmem>>, vector<2x32xf32>,
    } else {
    }
    %c0_i32_2 = arith.constant 0 : i32
    %5 = arith.cmpi eq, %arg1, %c0_i32_2 : i32
    %6 = arith.extui %5 : i1 to i32
    %c0_i32_3 = arith.constant 0 : i32
    %7 = arith.cmpi ne, %6, %c0_i32_3 : i32
    scf.if %7 {
      %c0_22 = arith.constant 0 : index
      %c0_23 = arith.constant 0 : index
      %31 = vector.load %arg5[%c0_22, %c0_23] : memref<64x128xf32, #tpu.memory_space<vmem>>, vector<64x128xf32>
      %c0_24 = arith.constant 0 : index
      %c0_25 = arith.constant 0 : index
      %32 = vector.load %arg6[%c0_24, %c0_25] : memref<1x128xf32, #tpu.memory_space<vmem>>, vector<1x128xf32>
      %c0_26 = arith.constant 0 : index
      %c0_27 = arith.constant 0 : index
      %33 = vector.load %arg12[%c0_26, %c0_27] : memref<2x32xf32, #tpu.memory_space<vmem>>, vector<2x32xf32>
      %c0_28 = arith.constant 0 : index
      %c0_29 = arith.constant 0 : index
      %34 = vector.load %arg13[%c0_28, %c0_29] : memref<2x32xf32, #tpu.memory_space<vmem>>, vector<2x32xf32>
      %c0_30 = arith.constant 0 : index
      %c0_31 = arith.constant 0 : index
      %c0_32 = arith.constant 0 : index
      %35 = vector.load %arg2[%c0_30, %c0_31, %c0_32] : memref<2x8x32xf32, #tpu.memory_space<vmem>>, vector<2x1x32xf32>
      %36 = vector.shape_cast %35 : vector<2x1x32xf32> to vector<2x32xf32>
      %37 = tpu.concatenate %36, %33 in 1 : vector<2x32xf32>, vector<2x32xf32> -> vector<2x64xf32>
      %cst_33 = arith.constant dense<0.000000e+00> : vector<2x128xf32>
      %38 = tpu.matmul %37, %31, %cst_33 {dimension_numbers = #tpu.dot_dimension_numbers<[1], [0], [0], [1], [0, 0, 1, 1], [], []>} : vector<2x64xf32>, vector<64x128xf32>, vector<2x128xf32> -> vector<2x128xf32>
      %39 = vector.broadcast %32 : vector<1x128xf32> to vector<2x128xf32>
      %40 = arith.addf %38, %39 : vector<2x128xf32>
      %41 = vector.extract_strided_slice %40 {offsets = [0, 0], sizes = [2, 32], strides = [1, 1]} : vector<2x128xf32> to vector<2x32xf32>
      %42 = arith.negf %41 : vector<2x32xf32>
      %43 = math.exp %42 : vector<2x32xf32>
      %cst_34 = arith.constant 1.000000e+00 : f32
      %44 = vector.broadcast %cst_34 : f32 to vector<2x32xf32>
      %45 = arith.addf %44, %43 : vector<2x32xf32>
      %46 = arith.divf %44, %45 : vector<2x32xf32>
      %47 = vector.extract_strided_slice %40 {offsets = [0, 32], sizes = [2, 32], strides = [1, 1]} : vector<2x128xf32> to vector<2x32xf32>
      %48 = arith.negf %47 : vector<2x32xf32>
      %49 = math.exp %48 : vector<2x32xf32>
      %cst_35 = arith.constant 1.000000e+00 : f32
      %50 = vector.broadcast %cst_35 : f32 to vector<2x32xf32>
      %51 = arith.addf %50, %49 : vector<2x32xf32>
      %52 = arith.divf %50, %51 : vector<2x32xf32>
      %53 = vector.extract_strided_slice %40 {offsets = [0, 64], sizes = [2, 32], strides = [1, 1]} : vector<2x128xf32> to vector<2x32xf32>
      %54 = math.tanh %53 : vector<2x32xf32>
      %55 = vector.extract_strided_slice %40 {offsets = [0, 96], sizes = [2, 32], strides = [1, 1]} : vector<2x128xf32> to vector<2x32xf32>
      %56 = arith.negf %55 : vector<2x32xf32>
      %57 = math.exp %56 : vector<2x32xf32>
      %cst_36 = arith.constant 1.000000e+00 : f32
      %58 = vector.broadcast %cst_36 : f32 to vector<2x32xf32>
      %59 = arith.addf %58, %57 : vector<2x32xf32>
      %60 = arith.divf %58, %59 : vector<2x32xf32>
      %61 = arith.mulf %52, %34 : vector<2x32xf32>
      %62 = arith.mulf %46, %54 : vector<2x32xf32>
      %63 = arith.addf %61, %62 : vector<2x32xf32>
      %64 = math.tanh %63 : vector<2x32xf32>
      %65 = arith.mulf %60, %64 : vector<2x32xf32>
      %c0_37 = arith.constant 0 : index
      %c0_38 = arith.constant 0 : index
      %c0_39 = arith.constant 0 : index
      %66 = vector.load %arg14[%c0_37, %c0_38, %c0_39] : memref<2x8x32xf32, #tpu.memory_space<vmem>>, vector<2x1x32xf32>
      %67 = vector.shape_cast %66 : vector<2x1x32xf32> to vector<2x32xf32>
      %68 = vector.shape_cast %65 : vector<2x32xf32> to vector<2x1x32xf32>
      tpu.vector_store %arg14[%c0_37, %c0_38, %c0_39], %68 {strides = array<i32>} : memref<2x8x32xf32, #tpu.memory_space<vmem>>, vector<2x1x32xf32>,
      %c0_40 = arith.constant 0 : index
      %c1_41 = arith.constant 1 : index
      %c0_42 = arith.constant 0 : index
      %69 = vector.load %arg2[%c0_40, %c1_41, %c0_42] : memref<2x8x32xf32, #tpu.memory_space<vmem>>, vector<2x1x32xf32>
      %70 = vector.shape_cast %69 : vector<2x1x32xf32> to vector<2x32xf32>
      %71 = tpu.concatenate %70, %65 in 1 : vector<2x32xf32>, vector<2x32xf32> -> vector<2x64xf32>
      %cst_43 = arith.constant dense<0.000000e+00> : vector<2x128xf32>
      %72 = tpu.matmul %71, %31, %cst_43 {dimension_numbers = #tpu.dot_dimension_numbers<[1], [0], [0], [1], [0, 0, 1, 1], [], []>} : vector<2x64xf32>, vector<64x128xf32>, vector<2x128xf32> -> vector<2x128xf32>
      %73 = vector.broadcast %32 : vector<1x128xf32> to vector<2x128xf32>
      %74 = arith.addf %72, %73 : vector<2x128xf32>
      %75 = vector.extract_strided_slice %74 {offsets = [0, 0], sizes = [2, 32], strides = [1, 1]} : vector<2x128xf32> to vector<2x32xf32>
      %76 = arith.negf %75 : vector<2x32xf32>
      %77 = math.exp %76 : vector<2x32xf32>
      %cst_44 = arith.constant 1.000000e+00 : f32
      %78 = vector.broadcast %cst_44 : f32 to vector<2x32xf32>
      %79 = arith.addf %78, %77 : vector<2x32xf32>
      %80 = arith.divf %78, %79 : vector<2x32xf32>
      %81 = vector.extract_strided_slice %74 {offsets = [0, 32], sizes = [2, 32], strides = [1, 1]} : vector<2x128xf32> to vector<2x32xf32>
      %82 = arith.negf %81 : vector<2x32xf32>
      %83 = math.exp %82 : vector<2x32xf32>
      %cst_45 = arith.constant 1.000000e+00 : f32
      %84 = vector.broadcast %cst_45 : f32 to vector<2x32xf32>
      %85 = arith.addf %84, %83 : vector<2x32xf32>
      %86 = arith.divf %84, %85 : vector<2x32xf32>
      %87 = vector.extract_strided_slice %74 {offsets = [0, 64], sizes = [2, 32], strides = [1, 1]} : vector<2x128xf32> to vector<2x32xf32>
      %88 = math.tanh %87 : vector<2x32xf32>
      %89 = vector.extract_strided_slice %74 {offsets = [0, 96], sizes = [2, 32], strides = [1, 1]} : vector<2x128xf32> to vector<2x32xf32>
      %90 = arith.negf %89 : vector<2x32xf32>
      %91 = math.exp %90 : vector<2x32xf32>
      %cst_46 = arith.constant 1.000000e+00 : f32
      %92 = vector.broadcast %cst_46 : f32 to vector<2x32xf32>
      %93 = arith.addf %92, %91 : vector<2x32xf32>
      %94 = arith.divf %92, %93 : vector<2x32xf32>
      %95 = arith.mulf %86, %63 : vector<2x32xf32>
      %96 = arith.mulf %80, %88 : vector<2x32xf32>
      %97 = arith.addf %95, %96 : vector<2x32xf32>
      %98 = math.tanh %97 : vector<2x32xf32>
      %99 = arith.mulf %94, %98 : vector<2x32xf32>
      %c0_47 = arith.constant 0 : index
      %c1_48 = arith.constant 1 : index
      %c0_49 = arith.constant 0 : index
      %100 = vector.load %arg14[%c0_47, %c1_48, %c0_49] : memref<2x8x32xf32, #tpu.memory_space<vmem>>, vector<2x1x32xf32>
      %101 = vector.shape_cast %100 : vector<2x1x32xf32> to vector<2x32xf32>
      %102 = vector.shape_cast %99 : vector<2x32xf32> to vector<2x1x32xf32>
      tpu.vector_store %arg14[%c0_47, %c1_48, %c0_49], %102 {strides = array<i32>} : memref<2x8x32xf32, #tpu.memory_space<vmem>>, vector<2x1x32xf32>,
      %c0_50 = arith.constant 0 : index
      %c2 = arith.constant 2 : index
      %c0_51 = arith.constant 0 : index
      %103 = vector.load %arg2[%c0_50, %c2, %c0_51] : memref<2x8x32xf32, #tpu.memory_space<vmem>>, vector<2x1x32xf32>
      %104 = vector.shape_cast %103 : vector<2x1x32xf32> to vector<2x32xf32>
      %105 = tpu.concatenate %104, %99 in 1 : vector<2x32xf32>, vector<2x32xf32> -> vector<2x64xf32>
      %cst_52 = arith.constant dense<0.000000e+00> : vector<2x128xf32>
      %106 = tpu.matmul %105, %31, %cst_52 {dimension_numbers = #tpu.dot_dimension_numbers<[1], [0], [0], [1], [0, 0, 1, 1], [], []>} : vector<2x64xf32>, vector<64x128xf32>, vector<2x128xf32> -> vector<2x128xf32>
      %107 = vector.broadcast %32 : vector<1x128xf32> to vector<2x128xf32>
      %108 = arith.addf %106, %107 : vector<2x128xf32>
      %109 = vector.extract_strided_slice %108 {offsets = [0, 0], sizes = [2, 32], strides = [1, 1]} : vector<2x128xf32> to vector<2x32xf32>
      %110 = arith.negf %109 : vector<2x32xf32>
      %111 = math.exp %110 : vector<2x32xf32>
      %cst_53 = arith.constant 1.000000e+00 : f32
      %112 = vector.broadcast %cst_53 : f32 to vector<2x32xf32>
      %113 = arith.addf %112, %111 : vector<2x32xf32>
      %114 = arith.divf %112, %113 : vector<2x32xf32>
      %115 = vector.extract_strided_slice %108 {offsets = [0, 32], sizes = [2, 32], strides = [1, 1]} : vector<2x128xf32> to vector<2x32xf32>
      %116 = arith.negf %115 : vector<2x32xf32>
      %117 = math.exp %116 : vector<2x32xf32>
      %cst_54 = arith.constant 1.000000e+00 : f32
      %118 = vector.broadcast %cst_54 : f32 to vector<2x32xf32>
      %119 = arith.addf %118, %117 : vector<2x32xf32>
      %120 = arith.divf %118, %119 : vector<2x32xf32>
      %121 = vector.extract_strided_slice %108 {offsets = [0, 64], sizes = [2, 32], strides = [1, 1]} : vector<2x128xf32> to vector<2x32xf32>
      %122 = math.tanh %121 : vector<2x32xf32>
      %123 = vector.extract_strided_slice %108 {offsets = [0, 96], sizes = [2, 32], strides = [1, 1]} : vector<2x128xf32> to vector<2x32xf32>
      %124 = arith.negf %123 : vector<2x32xf32>
      %125 = math.exp %124 : vector<2x32xf32>
      %cst_55 = arith.constant 1.000000e+00 : f32
      %126 = vector.broadcast %cst_55 : f32 to vector<2x32xf32>
      %127 = arith.addf %126, %125 : vector<2x32xf32>
      %128 = arith.divf %126, %127 : vector<2x32xf32>
      %129 = arith.mulf %120, %97 : vector<2x32xf32>
      %130 = arith.mulf %114, %122 : vector<2x32xf32>
      %131 = arith.addf %129, %130 : vector<2x32xf32>
      %132 = math.tanh %131 : vector<2x32xf32>
      %133 = arith.mulf %128, %132 : vector<2x32xf32>
      %c0_56 = arith.constant 0 : index
      %c2_57 = arith.constant 2 : index
      %c0_58 = arith.constant 0 : index
      %134 = vector.load %arg14[%c0_56, %c2_57, %c0_58] : memref<2x8x32xf32, #tpu.memory_space<vmem>>, vector<2x1x32xf32>
      %135 = vector.shape_cast %134 : vector<2x1x32xf32> to vector<2x32xf32>
      %136 = vector.shape_cast %133 : vector<2x32xf32> to vector<2x1x32xf32>
      tpu.vector_store %arg14[%c0_56, %c2_57, %c0_58], %136 {strides = array<i32>} : memref<2x8x32xf32, #tpu.memory_space<vmem>>, vector<2x1x32xf32>,
      %c0_59 = arith.constant 0 : index
      %c3 = arith.constant 3 : index
      %c0_60 = arith.constant 0 : index
      %137 = vector.load %arg2[%c0_59, %c3, %c0_60] : memref<2x8x32xf32, #tpu.memory_space<vmem>>, vector<2x1x32xf32>
      %138 = vector.shape_cast %137 : vector<2x1x32xf32> to vector<2x32xf32>
      %139 = tpu.concatenate %138, %133 in 1 : vector<2x32xf32>, vector<2x32xf32> -> vector<2x64xf32>
      %cst_61 = arith.constant dense<0.000000e+00> : vector<2x128xf32>
      %140 = tpu.matmul %139, %31, %cst_61 {dimension_numbers = #tpu.dot_dimension_numbers<[1], [0], [0], [1], [0, 0, 1, 1], [], []>} : vector<2x64xf32>, vector<64x128xf32>, vector<2x128xf32> -> vector<2x128xf32>
      %141 = vector.broadcast %32 : vector<1x128xf32> to vector<2x128xf32>
      %142 = arith.addf %140, %141 : vector<2x128xf32>
      %143 = vector.extract_strided_slice %142 {offsets = [0, 0], sizes = [2, 32], strides = [1, 1]} : vector<2x128xf32> to vector<2x32xf32>
      %144 = arith.negf %143 : vector<2x32xf32>
      %145 = math.exp %144 : vector<2x32xf32>
      %cst_62 = arith.constant 1.000000e+00 : f32
      %146 = vector.broadcast %cst_62 : f32 to vector<2x32xf32>
      %147 = arith.addf %146, %145 : vector<2x32xf32>
      %148 = arith.divf %146, %147 : vector<2x32xf32>
      %149 = vector.extract_strided_slice %142 {offsets = [0, 32], sizes = [2, 32], strides = [1, 1]} : vector<2x128xf32> to vector<2x32xf32>
      %150 = arith.negf %149 : vector<2x32xf32>
      %151 = math.exp %150 : vector<2x32xf32>
      %cst_63 = arith.constant 1.000000e+00 : f32
      %152 = vector.broadcast %cst_63 : f32 to vector<2x32xf32>
      %153 = arith.addf %152, %151 : vector<2x32xf32>
      %154 = arith.divf %152, %153 : vector<2x32xf32>
      %155 = vector.extract_strided_slice %142 {offsets = [0, 64], sizes = [2, 32], strides = [1, 1]} : vector<2x128xf32> to vector<2x32xf32>
      %156 = math.tanh %155 : vector<2x32xf32>
      %157 = vector.extract_strided_slice %142 {offsets = [0, 96], sizes = [2, 32], strides = [1, 1]} : vector<2x128xf32> to vector<2x32xf32>
      %158 = arith.negf %157 : vector<2x32xf32>
      %159 = math.exp %158 : vector<2x32xf32>
      %cst_64 = arith.constant 1.000000e+00 : f32
      %160 = vector.broadcast %cst_64 : f32 to vector<2x32xf32>
      %161 = arith.addf %160, %159 : vector<2x32xf32>
      %162 = arith.divf %160, %161 : vector<2x32xf32>
      %163 = arith.mulf %154, %131 : vector<2x32xf32>
      %164 = arith.mulf %148, %156 : vector<2x32xf32>
      %165 = arith.addf %163, %164 : vector<2x32xf32>
      %166 = math.tanh %165 : vector<2x32xf32>
      %167 = arith.mulf %162, %166 : vector<2x32xf32>
      %c0_65 = arith.constant 0 : index
      %c3_66 = arith.constant 3 : index
      %c0_67 = arith.constant 0 : index
      %168 = vector.load %arg14[%c0_65, %c3_66, %c0_67] : memref<2x8x32xf32, #tpu.memory_space<vmem>>, vector<2x1x32xf32>
      %169 = vector.shape_cast %168 : vector<2x1x32xf32> to vector<2x32xf32>
      %170 = vector.shape_cast %167 : vector<2x32xf32> to vector<2x1x32xf32>
      tpu.vector_store %arg14[%c0_65, %c3_66, %c0_67], %170 {strides = array<i32>} : memref<2x8x32xf32, #tpu.memory_space<vmem>>, vector<2x1x32xf32>,
      %c0_68 = arith.constant 0 : index
      %c4 = arith.constant 4 : index
      %c0_69 = arith.constant 0 : index
      %171 = vector.load %arg2[%c0_68, %c4, %c0_69] : memref<2x8x32xf32, #tpu.memory_space<vmem>>, vector<2x1x32xf32>
      %172 = vector.shape_cast %171 : vector<2x1x32xf32> to vector<2x32xf32>
      %173 = tpu.concatenate %172, %167 in 1 : vector<2x32xf32>, vector<2x32xf32> -> vector<2x64xf32>
      %cst_70 = arith.constant dense<0.000000e+00> : vector<2x128xf32>
      %174 = tpu.matmul %173, %31, %cst_70 {dimension_numbers = #tpu.dot_dimension_numbers<[1], [0], [0], [1], [0, 0, 1, 1], [], []>} : vector<2x64xf32>, vector<64x128xf32>, vector<2x128xf32> -> vector<2x128xf32>
      %175 = vector.broadcast %32 : vector<1x128xf32> to vector<2x128xf32>
      %176 = arith.addf %174, %175 : vector<2x128xf32>
      %177 = vector.extract_strided_slice %176 {offsets = [0, 0], sizes = [2, 32], strides = [1, 1]} : vector<2x128xf32> to vector<2x32xf32>
      %178 = arith.negf %177 : vector<2x32xf32>
      %179 = math.exp %178 : vector<2x32xf32>
      %cst_71 = arith.constant 1.000000e+00 : f32
      %180 = vector.broadcast %cst_71 : f32 to vector<2x32xf32>
      %181 = arith.addf %180, %179 : vector<2x32xf32>
      %182 = arith.divf %180, %181 : vector<2x32xf32>
      %183 = vector.extract_strided_slice %176 {offsets = [0, 32], sizes = [2, 32], strides = [1, 1]} : vector<2x128xf32> to vector<2x32xf32>
      %184 = arith.negf %183 : vector<2x32xf32>
      %185 = math.exp %184 : vector<2x32xf32>
      %cst_72 = arith.constant 1.000000e+00 : f32
      %186 = vector.broadcast %cst_72 : f32 to vector<2x32xf32>
      %187 = arith.addf %186, %185 : vector<2x32xf32>
      %188 = arith.divf %186, %187 : vector<2x32xf32>
      %189 = vector.extract_strided_slice %176 {offsets = [0, 64], sizes = [2, 32], strides = [1, 1]} : vector<2x128xf32> to vector<2x32xf32>
      %190 = math.tanh %189 : vector<2x32xf32>
      %191 = vector.extract_strided_slice %176 {offsets = [0, 96], sizes = [2, 32], strides = [1, 1]} : vector<2x128xf32> to vector<2x32xf32>
      %192 = arith.negf %191 : vector<2x32xf32>
      %193 = math.exp %192 : vector<2x32xf32>
      %cst_73 = arith.constant 1.000000e+00 : f32
      %194 = vector.broadcast %cst_73 : f32 to vector<2x32xf32>
      %195 = arith.addf %194, %193 : vector<2x32xf32>
      %196 = arith.divf %194, %195 : vector<2x32xf32>
      %197 = arith.mulf %188, %165 : vector<2x32xf32>
      %198 = arith.mulf %182, %190 : vector<2x32xf32>
      %199 = arith.addf %197, %198 : vector<2x32xf32>
      %200 = math.tanh %199 : vector<2x32xf32>
      %201 = arith.mulf %196, %200 : vector<2x32xf32>
      %c0_74 = arith.constant 0 : index
      %c4_75 = arith.constant 4 : index
      %c0_76 = arith.constant 0 : index
      %202 = vector.load %arg14[%c0_74, %c4_75, %c0_76] : memref<2x8x32xf32, #tpu.memory_space<vmem>>, vector<2x1x32xf32>
      %203 = vector.shape_cast %202 : vector<2x1x32xf32> to vector<2x32xf32>
      %204 = vector.shape_cast %201 : vector<2x32xf32> to vector<2x1x32xf32>
      tpu.vector_store %arg14[%c0_74, %c4_75, %c0_76], %204 {strides = array<i32>} : memref<2x8x32xf32, #tpu.memory_space<vmem>>, vector<2x1x32xf32>,
      %c0_77 = arith.constant 0 : index
      %c5 = arith.constant 5 : index
      %c0_78 = arith.constant 0 : index
      %205 = vector.load %arg2[%c0_77, %c5, %c0_78] : memref<2x8x32xf32, #tpu.memory_space<vmem>>, vector<2x1x32xf32>
      %206 = vector.shape_cast %205 : vector<2x1x32xf32> to vector<2x32xf32>
      %207 = tpu.concatenate %206, %201 in 1 : vector<2x32xf32>, vector<2x32xf32> -> vector<2x64xf32>
      %cst_79 = arith.constant dense<0.000000e+00> : vector<2x128xf32>
      %208 = tpu.matmul %207, %31, %cst_79 {dimension_numbers = #tpu.dot_dimension_numbers<[1], [0], [0], [1], [0, 0, 1, 1], [], []>} : vector<2x64xf32>, vector<64x128xf32>, vector<2x128xf32> -> vector<2x128xf32>
      %209 = vector.broadcast %32 : vector<1x128xf32> to vector<2x128xf32>
      %210 = arith.addf %208, %209 : vector<2x128xf32>
      %211 = vector.extract_strided_slice %210 {offsets = [0, 0], sizes = [2, 32], strides = [1, 1]} : vector<2x128xf32> to vector<2x32xf32>
      %212 = arith.negf %211 : vector<2x32xf32>
      %213 = math.exp %212 : vector<2x32xf32>
      %cst_80 = arith.constant 1.000000e+00 : f32
      %214 = vector.broadcast %cst_80 : f32 to vector<2x32xf32>
      %215 = arith.addf %214, %213 : vector<2x32xf32>
      %216 = arith.divf %214, %215 : vector<2x32xf32>
      %217 = vector.extract_strided_slice %210 {offsets = [0, 32], sizes = [2, 32], strides = [1, 1]} : vector<2x128xf32> to vector<2x32xf32>
      %218 = arith.negf %217 : vector<2x32xf32>
      %219 = math.exp %218 : vector<2x32xf32>
      %cst_81 = arith.constant 1.000000e+00 : f32
      %220 = vector.broadcast %cst_81 : f32 to vector<2x32xf32>
      %221 = arith.addf %220, %219 : vector<2x32xf32>
      %222 = arith.divf %220, %221 : vector<2x32xf32>
      %223 = vector.extract_strided_slice %210 {offsets = [0, 64], sizes = [2, 32], strides = [1, 1]} : vector<2x128xf32> to vector<2x32xf32>
      %224 = math.tanh %223 : vector<2x32xf32>
      %225 = vector.extract_strided_slice %210 {offsets = [0, 96], sizes = [2, 32], strides = [1, 1]} : vector<2x128xf32> to vector<2x32xf32>
      %226 = arith.negf %225 : vector<2x32xf32>
      %227 = math.exp %226 : vector<2x32xf32>
      %cst_82 = arith.constant 1.000000e+00 : f32
      %228 = vector.broadcast %cst_82 : f32 to vector<2x32xf32>
      %229 = arith.addf %228, %227 : vector<2x32xf32>
      %230 = arith.divf %228, %229 : vector<2x32xf32>
      %231 = arith.mulf %222, %199 : vector<2x32xf32>
      %232 = arith.mulf %216, %224 : vector<2x32xf32>
      %233 = arith.addf %231, %232 : vector<2x32xf32>
      %234 = math.tanh %233 : vector<2x32xf32>
      %235 = arith.mulf %230, %234 : vector<2x32xf32>
      %c0_83 = arith.constant 0 : index
      %c5_84 = arith.constant 5 : index
      %c0_85 = arith.constant 0 : index
      %236 = vector.load %arg14[%c0_83, %c5_84, %c0_85] : memref<2x8x32xf32, #tpu.memory_space<vmem>>, vector<2x1x32xf32>
      %237 = vector.shape_cast %236 : vector<2x1x32xf32> to vector<2x32xf32>
      %238 = vector.shape_cast %235 : vector<2x32xf32> to vector<2x1x32xf32>
      tpu.vector_store %arg14[%c0_83, %c5_84, %c0_85], %238 {strides = array<i32>} : memref<2x8x32xf32, #tpu.memory_space<vmem>>, vector<2x1x32xf32>,
      %c0_86 = arith.constant 0 : index
      %c6 = arith.constant 6 : index
      %c0_87 = arith.constant 0 : index
      %239 = vector.load %arg2[%c0_86, %c6, %c0_87] : memref<2x8x32xf32, #tpu.memory_space<vmem>>, vector<2x1x32xf32>
      %240 = vector.shape_cast %239 : vector<2x1x32xf32> to vector<2x32xf32>
      %241 = tpu.concatenate %240, %235 in 1 : vector<2x32xf32>, vector<2x32xf32> -> vector<2x64xf32>
      %cst_88 = arith.constant dense<0.000000e+00> : vector<2x128xf32>
      %242 = tpu.matmul %241, %31, %cst_88 {dimension_numbers = #tpu.dot_dimension_numbers<[1], [0], [0], [1], [0, 0, 1, 1], [], []>} : vector<2x64xf32>, vector<64x128xf32>, vector<2x128xf32> -> vector<2x128xf32>
      %243 = vector.broadcast %32 : vector<1x128xf32> to vector<2x128xf32>
      %244 = arith.addf %242, %243 : vector<2x128xf32>
      %245 = vector.extract_strided_slice %244 {offsets = [0, 0], sizes = [2, 32], strides = [1, 1]} : vector<2x128xf32> to vector<2x32xf32>
      %246 = arith.negf %245 : vector<2x32xf32>
      %247 = math.exp %246 : vector<2x32xf32>
      %cst_89 = arith.constant 1.000000e+00 : f32
      %248 = vector.broadcast %cst_89 : f32 to vector<2x32xf32>
      %249 = arith.addf %248, %247 : vector<2x32xf32>
      %250 = arith.divf %248, %249 : vector<2x32xf32>
      %251 = vector.extract_strided_slice %244 {offsets = [0, 32], sizes = [2, 32], strides = [1, 1]} : vector<2x128xf32> to vector<2x32xf32>
      %252 = arith.negf %251 : vector<2x32xf32>
      %253 = math.exp %252 : vector<2x32xf32>
      %cst_90 = arith.constant 1.000000e+00 : f32
      %254 = vector.broadcast %cst_90 : f32 to vector<2x32xf32>
      %255 = arith.addf %254, %253 : vector<2x32xf32>
      %256 = arith.divf %254, %255 : vector<2x32xf32>
      %257 = vector.extract_strided_slice %244 {offsets = [0, 64], sizes = [2, 32], strides = [1, 1]} : vector<2x128xf32> to vector<2x32xf32>
      %258 = math.tanh %257 : vector<2x32xf32>
      %259 = vector.extract_strided_slice %244 {offsets = [0, 96], sizes = [2, 32], strides = [1, 1]} : vector<2x128xf32> to vector<2x32xf32>
      %260 = arith.negf %259 : vector<2x32xf32>
      %261 = math.exp %260 : vector<2x32xf32>
      %cst_91 = arith.constant 1.000000e+00 : f32
      %262 = vector.broadcast %cst_91 : f32 to vector<2x32xf32>
      %263 = arith.addf %262, %261 : vector<2x32xf32>
      %264 = arith.divf %262, %263 : vector<2x32xf32>
      %265 = arith.mulf %256, %233 : vector<2x32xf32>
      %266 = arith.mulf %250, %258 : vector<2x32xf32>
      %267 = arith.addf %265, %266 : vector<2x32xf32>
      %268 = math.tanh %267 : vector<2x32xf32>
      %269 = arith.mulf %264, %268 : vector<2x32xf32>
      %c0_92 = arith.constant 0 : index
      %c6_93 = arith.constant 6 : index
      %c0_94 = arith.constant 0 : index
      %270 = vector.load %arg14[%c0_92, %c6_93, %c0_94] : memref<2x8x32xf32, #tpu.memory_space<vmem>>, vector<2x1x32xf32>
      %271 = vector.shape_cast %270 : vector<2x1x32xf32> to vector<2x32xf32>
      %272 = vector.shape_cast %269 : vector<2x32xf32> to vector<2x1x32xf32>
      tpu.vector_store %arg14[%c0_92, %c6_93, %c0_94], %272 {strides = array<i32>} : memref<2x8x32xf32, #tpu.memory_space<vmem>>, vector<2x1x32xf32>,
      %c0_95 = arith.constant 0 : index
      %c7 = arith.constant 7 : index
      %c0_96 = arith.constant 0 : index
      %273 = vector.load %arg2[%c0_95, %c7, %c0_96] : memref<2x8x32xf32, #tpu.memory_space<vmem>>, vector<2x1x32xf32>
      %274 = vector.shape_cast %273 : vector<2x1x32xf32> to vector<2x32xf32>
      %275 = tpu.concatenate %274, %269 in 1 : vector<2x32xf32>, vector<2x32xf32> -> vector<2x64xf32>
      %cst_97 = arith.constant dense<0.000000e+00> : vector<2x128xf32>
      %276 = tpu.matmul %275, %31, %cst_97 {dimension_numbers = #tpu.dot_dimension_numbers<[1], [0], [0], [1], [0, 0, 1, 1], [], []>} : vector<2x64xf32>, vector<64x128xf32>, vector<2x128xf32> -> vector<2x128xf32>
      %277 = vector.broadcast %32 : vector<1x128xf32> to vector<2x128xf32>
      %278 = arith.addf %276, %277 : vector<2x128xf32>
      %279 = vector.extract_strided_slice %278 {offsets = [0, 0], sizes = [2, 32], strides = [1, 1]} : vector<2x128xf32> to vector<2x32xf32>
      %280 = arith.negf %279 : vector<2x32xf32>
      %281 = math.exp %280 : vector<2x32xf32>
      %cst_98 = arith.constant 1.000000e+00 : f32
      %282 = vector.broadcast %cst_98 : f32 to vector<2x32xf32>
      %283 = arith.addf %282, %281 : vector<2x32xf32>
      %284 = arith.divf %282, %283 : vector<2x32xf32>
      %285 = vector.extract_strided_slice %278 {offsets = [0, 32], sizes = [2, 32], strides = [1, 1]} : vector<2x128xf32> to vector<2x32xf32>
      %286 = arith.negf %285 : vector<2x32xf32>
      %287 = math.exp %286 : vector<2x32xf32>
      %cst_99 = arith.constant 1.000000e+00 : f32
      %288 = vector.broadcast %cst_99 : f32 to vector<2x32xf32>
      %289 = arith.addf %288, %287 : vector<2x32xf32>
      %290 = arith.divf %288, %289 : vector<2x32xf32>
      %291 = vector.extract_strided_slice %278 {offsets = [0, 64], sizes = [2, 32], strides = [1, 1]} : vector<2x128xf32> to vector<2x32xf32>
      %292 = math.tanh %291 : vector<2x32xf32>
      %293 = vector.extract_strided_slice %278 {offsets = [0, 96], sizes = [2, 32], strides = [1, 1]} : vector<2x128xf32> to vector<2x32xf32>
      %294 = arith.negf %293 : vector<2x32xf32>
      %295 = math.exp %294 : vector<2x32xf32>
      %cst_100 = arith.constant 1.000000e+00 : f32
      %296 = vector.broadcast %cst_100 : f32 to vector<2x32xf32>
      %297 = arith.addf %296, %295 : vector<2x32xf32>
      %298 = arith.divf %296, %297 : vector<2x32xf32>
      %299 = arith.mulf %290, %267 : vector<2x32xf32>
      %300 = arith.mulf %284, %292 : vector<2x32xf32>
      %301 = arith.addf %299, %300 : vector<2x32xf32>
      %302 = math.tanh %301 : vector<2x32xf32>
      %303 = arith.mulf %298, %302 : vector<2x32xf32>
      %c0_101 = arith.constant 0 : index
      %c7_102 = arith.constant 7 : index
      %c0_103 = arith.constant 0 : index
      %304 = vector.load %arg14[%c0_101, %c7_102, %c0_103] : memref<2x8x32xf32, #tpu.memory_space<vmem>>, vector<2x1x32xf32>
      %305 = vector.shape_cast %304 : vector<2x1x32xf32> to vector<2x32xf32>
      %306 = vector.shape_cast %303 : vector<2x32xf32> to vector<2x1x32xf32>
      tpu.vector_store %arg14[%c0_101, %c7_102, %c0_103], %306 {strides = array<i32>} : memref<2x8x32xf32, #tpu.memory_space<vmem>>, vector<2x1x32xf32>,
      %c0_104 = arith.constant 0 : index
      %c0_105 = arith.constant 0 : index
      %307 = vector.load %arg12[%c0_104, %c0_105] : memref<2x32xf32, #tpu.memory_space<vmem>>, vector<2x32xf32>
      tpu.vector_store %arg12[%c0_104, %c0_105], %303 {strides = array<i32>} : memref<2x32xf32, #tpu.memory_space<vmem>>, vector<2x32xf32>,
      %c0_106 = arith.constant 0 : index
      %c0_107 = arith.constant 0 : index
      %308 = vector.load %arg13[%c0_106, %c0_107] : memref<2x32xf32, #tpu.memory_space<vmem>>, vector<2x32xf32>
      tpu.vector_store %arg13[%c0_106, %c0_107], %301 {strides = array<i32>} : memref<2x32xf32, #tpu.memory_space<vmem>>, vector<2x32xf32>,
    } else {
    }
    %c0 = arith.constant 0 : index
    %c0_4 = arith.constant 0 : index
    %8 = vector.load %arg7[%c0, %c0_4] : memref<32x32xf32, #tpu.memory_space<vmem>>, vector<32x32xf32>
    %c0_5 = arith.constant 0 : index
    %c0_6 = arith.constant 0 : index
    %9 = vector.load %arg8[%c0_5, %c0_6] : memref<1x32xf32, #tpu.memory_space<vmem>>, vector<1x32xf32>
    %c0_7 = arith.constant 0 : index
    %c0_8 = arith.constant 0 : index
    %c0_9 = arith.constant 0 : index
    %10 = vector.load %arg14[%c0_7, %c0_8, %c0_9] : memref<2x8x32xf32, #tpu.memory_space<vmem>>, vector<1x8x32xf32>
    %11 = vector.shape_cast %10 : vector<1x8x32xf32> to vector<8x32xf32>
    %cst = arith.constant dense<0.000000e+00> : vector<8x32xf32>
    %12 = tpu.matmul %11, %8, %cst {dimension_numbers = #tpu.dot_dimension_numbers<[1], [0], [0], [1], [0, 0, 1, 1], [], []>} : vector<8x32xf32>, vector<32x32xf32>, vector<8x32xf32> -> vector<8x32xf32>
    %13 = vector.broadcast %9 : vector<1x32xf32> to vector<8x32xf32>
    %14 = arith.addf %12, %13 : vector<8x32xf32>
    %c0_10 = arith.constant 0 : index
    %c0_11 = arith.constant 0 : index
    %c0_12 = arith.constant 0 : index
    %15 = vector.load %arg9[%c0_10, %c0_11, %c0_12] : memref<2x8x32xf32, #tpu.memory_space<vmem>>, vector<1x8x32xf32>
    %16 = vector.shape_cast %15 : vector<1x8x32xf32> to vector<8x32xf32>
    %17 = vector.shape_cast %14 : vector<8x32xf32> to vector<1x8x32xf32>
    tpu.vector_store %arg9[%c0_10, %c0_11, %c0_12], %17 {strides = array<i32>} : memref<2x8x32xf32, #tpu.memory_space<vmem>>, vector<1x8x32xf32>,
    %c1 = arith.constant 1 : index
    %c0_13 = arith.constant 0 : index
    %c0_14 = arith.constant 0 : index
    %18 = vector.load %arg14[%c1, %c0_13, %c0_14] : memref<2x8x32xf32, #tpu.memory_space<vmem>>, vector<1x8x32xf32>
    %19 = vector.shape_cast %18 : vector<1x8x32xf32> to vector<8x32xf32>
    %cst_15 = arith.constant dense<0.000000e+00> : vector<8x32xf32>
    %20 = tpu.matmul %19, %8, %cst_15 {dimension_numbers = #tpu.dot_dimension_numbers<[1], [0], [0], [1], [0, 0, 1, 1], [], []>} : vector<8x32xf32>, vector<32x32xf32>, vector<8x32xf32> -> vector<8x32xf32>
    %21 = vector.broadcast %9 : vector<1x32xf32> to vector<8x32xf32>
    %22 = arith.addf %20, %21 : vector<8x32xf32>
    %c1_16 = arith.constant 1 : index
    %c0_17 = arith.constant 0 : index
    %c0_18 = arith.constant 0 : index
    %23 = vector.load %arg9[%c1_16, %c0_17, %c0_18] : memref<2x8x32xf32, #tpu.memory_space<vmem>>, vector<1x8x32xf32>
    %24 = vector.shape_cast %23 : vector<1x8x32xf32> to vector<8x32xf32>
    %25 = vector.shape_cast %22 : vector<8x32xf32> to vector<1x8x32xf32>
    tpu.vector_store %arg9[%c1_16, %c0_17, %c0_18], %25 {strides = array<i32>} : memref<2x8x32xf32, #tpu.memory_space<vmem>>, vector<1x8x32xf32>,
    %c0_i32_19 = arith.constant 0 : i32
    %26 = arith.cmpi eq, %arg0, %c0_i32_19 : i32
    %c0_i32_20 = arith.constant 0 : i32
    %27 = arith.cmpi eq, %arg1, %c0_i32_20 : i32
    %28 = arith.andi %26, %27 : i1
    %29 = arith.extui %28 : i1 to i32
    %c0_i32_21 = arith.constant 0 : i32
    %30 = arith.cmpi ne, %29, %c0_i32_21 : i32
    scf.if %30 {
      %c0_22 = arith.constant 0 : index
      %c0_23 = arith.constant 0 : index
      %31 = vector.load %arg12[%c0_22, %c0_23] : memref<2x32xf32, #tpu.memory_space<vmem>>, vector<2x32xf32>
      %c0_24 = arith.constant 0 : index
      %c0_25 = arith.constant 0 : index
      %32 = vector.load %arg10[%c0_24, %c0_25] : memref<2x32xf32, #tpu.memory_space<vmem>>, vector<2x32xf32>
      tpu.vector_store %arg10[%c0_24, %c0_25], %31 {strides = array<i32>} : memref<2x32xf32, #tpu.memory_space<vmem>>, vector<2x32xf32>,
      %c0_26 = arith.constant 0 : index
      %c0_27 = arith.constant 0 : index
      %33 = vector.load %arg13[%c0_26, %c0_27] : memref<2x32xf32, #tpu.memory_space<vmem>>, vector<2x32xf32>
      %c0_28 = arith.constant 0 : index
      %c0_29 = arith.constant 0 : index
      %34 = vector.load %arg11[%c0_28, %c0_29] : memref<2x32xf32, #tpu.memory_space<vmem>>, vector<2x32xf32>
      tpu.vector_store %arg11[%c0_28, %c0_29], %33 {strides = array<i32>} : memref<2x32xf32, #tpu.memory_space<vmem>>, vector<2x32xf32>,
    } else {
    }
    return
  }
  func.func @transform_0(%arg0: i32, %arg1: i32) -> (i32, i32, i32) {
    %c0_i32 = arith.constant 0 : i32
    %c0_i32_0 = arith.constant 0 : i32
    %c0_i32_1 = arith.constant 0 : i32
    return %c0_i32, %arg0, %c0_i32_0 : i32, i32, i32
  }
  func.func @transform_1(%arg0: i32, %arg1: i32) -> (i32, i32) {
    %c0_i32 = arith.constant 0 : i32
    %c0_i32_0 = arith.constant 0 : i32
    %c0_i32_1 = arith.constant 0 : i32
    return %c0_i32, %c0_i32_0 : i32, i32
  }
  func.func @transform_2(%arg0: i32, %arg1: i32) -> (i32, i32) {
    %c0_i32 = arith.constant 0 : i32
    %c0_i32_0 = arith.constant 0 : i32
    %c0_i32_1 = arith.constant 0 : i32
    return %c0_i32, %c0_i32_0 : i32, i32
  }
  func.func @transform_3(%arg0: i32, %arg1: i32) -> (i32, i32) {
    %c0_i32 = arith.constant 0 : i32
    %c0_i32_0 = arith.constant 0 : i32
    %c0_i32_1 = arith.constant 0 : i32
    return %c0_i32, %c0_i32_0 : i32, i32
  }
  func.func @transform_4(%arg0: i32, %arg1: i32) -> (i32, i32) {
    %c0_i32 = arith.constant 0 : i32
    %c0_i32_0 = arith.constant 0 : i32
    %c0_i32_1 = arith.constant 0 : i32
    return %c0_i32, %c0_i32_0 : i32, i32
  }
  func.func @transform_5(%arg0: i32, %arg1: i32) -> (i32, i32) {
    %c0_i32 = arith.constant 0 : i32
    %c0_i32_0 = arith.constant 0 : i32
    return %c0_i32, %arg1 : i32, i32
  }
  func.func @transform_6(%arg0: i32, %arg1: i32) -> (i32, i32) {
    %c0_i32 = arith.constant 0 : i32
    %c0_i32_0 = arith.constant 0 : i32
    return %c0_i32, %arg1 : i32, i32
  }
  func.func @transform_7(%arg0: i32, %arg1: i32) -> (i32, i32, i32) {
    %c0_i32 = arith.constant 0 : i32
    %c0_i32_0 = arith.constant 0 : i32
    return %c0_i32, %arg0, %arg1 : i32, i32, i32
  }
  func.func @transform_8(%arg0: i32, %arg1: i32) -> (i32, i32) {
    %c0_i32 = arith.constant 0 : i32
    %c0_i32_0 = arith.constant 0 : i32
    %c0_i32_1 = arith.constant 0 : i32
    return %c0_i32, %c0_i32_0 : i32, i32
  }
  func.func @transform_9(%arg0: i32, %arg1: i32) -> (i32, i32) {
    %c0_i32 = arith.constant 0 : i32
    %c0_i32_0 = arith.constant 0 : i32
    %c0_i32_1 = arith.constant 0 : i32
    return %c0_i32, %c0_i32_0 : i32, i32
  }
}

</mosaic_0001>

<llo_original>
// kernel: model_forward.1
$region0: #{model_forward.1}
  #allocation0 [shape = 'u32[]', space=smem, size = 0x4, offset = 0x4, fixed_abs, tag = 'smem constant byte address 0x4 - core index']
  #allocation1 [shape = 'u32[144,128]{1,0:T(1,128)}', space=vmem, size = 0x12000, scoped, tag = 'internal scratch']
  #allocation2 [shape = 'f32[2,32]{1,0:T(2,128)}', space=vmem, size = 0x400, scoped, tag = 'scratch operand']
  #allocation3 [shape = 'f32[2,32]{1,0:T(2,128)}', space=vmem, size = 0x400, scoped, tag = 'scratch operand']
  #allocation4 [shape = 'f32[2,8,32]{2,1,0:T(8,128)}', space=vmem, size = 0x2000, scoped, tag = 'scratch operand']
  %s0 = inlined_call_operand.vmem [shape: f32[2,8,32], index: 0, kind: input, shape index: {}]
  %s1 = inlined_call_operand.vmem [shape: f32[2,32], index: 1, kind: input, shape index: {}, may-alias: {1,2}]
  %s2 = inlined_call_operand.vmem [shape: f32[2,32], index: 2, kind: input, shape index: {}, may-alias: {1,2}]
  %s3 = inlined_call_operand.vmem [shape: f32[64,128], index: 3, kind: input, shape index: {}]
  %s4 = inlined_call_operand.vmem [shape: f32[1,128], index: 4, kind: input, shape index: {}]
  %s5 = inlined_call_operand.vmem [shape: f32[32,32], index: 5, kind: input, shape index: {}]
  %s6 = inlined_call_operand.vmem [shape: f32[1,32], index: 6, kind: input, shape index: {}]
  %s7 = inlined_call_operand.hbm [shape: f32[2,8,32], index: 7, kind: output, shape index: {0}]
  %s8 = inlined_call_operand.hbm [shape: f32[2,32], index: 8, kind: output, shape index: {1}]
  %s9 = inlined_call_operand.hbm [shape: f32[2,32], index: 9, kind: output, shape index: {2}]
  %10 = xla_tuple %s7, %s8, %s9
  %s11 = sld [smem:[#allocation0]]
  $region66: #{model_forward.1} parent=0
    _
  %s13 = ssub.s32 1, %s11
  %s14 = scalar_select 0, %s13, %s11
  $region1: #{model_forward.1} parent=0
    #allocation5 [shape = 'u8[8192]{0}', space=vmem, size = 0x2000, scoped, tag = 'output window, operand 0, single buffered']
    #allocation6 [shape = 's32[1]{0}', space=sflag, size = 0x4, scoped, tag = 'scoped memory for model_forward.1']
    #allocation7 [shape = 'u8[1024]{0}', space=vmem, size = 0x400, scoped, tag = 'output window, operand 1, single buffered']
    #allocation8 [shape = 's32[1]{0}', space=sflag, size = 0x4, scoped, tag = 'scoped memory for model_forward.1']
    #allocation9 [shape = 'u8[1024]{0}', space=vmem, size = 0x400, scoped, tag = 'output window, operand 2, single buffered']
    %15 = vsyncpa [#allocation6], 0
    %16 = vsyncpa [#allocation8], 0
    // Predicated region
    $region2: #{model_forward.1} parent=1 // pred_check
      _
    $region3: #{model_forward.1} parent=1 // pred_check_branch
      %18 = sbr.rel (0) target = $region5
    $region4: #{model_forward.1} parent=1 // pred_region
      _
    $region5: #{model_forward.1} parent=1 // pred_fallthru
      _
    // Predicated region
    $region6: #{model_forward.1} parent=1 // pred_check
      _
    $region7: #{model_forward.1} parent=1 // pred_check_branch
      %20 = sbr.rel (0) target = $region9
    $region8: #{model_forward.1} parent=1 // pred_region
      _
    $region9: #{model_forward.1} parent=1 // pred_fallthru
      _
    // Predicated region
    $region10: #{model_forward.1} parent=1 // pred_check
      _
    $region11: #{model_forward.1} parent=1 // pred_check_branch
      %22 = sbr.rel (0) target = $region13
    $region12: #{model_forward.1} parent=1 // pred_region
      _
    $region13: #{model_forward.1} parent=1 // pred_fallthru
      _
    // Predicated region
    $region14: #{model_forward.1} parent=1 // pred_check
      _
    $region15: #{model_forward.1} parent=1 // pred_check_branch
      %24 = sbr.rel (0) target = $region17
    $region16: #{model_forward.1} parent=1 // pred_region
      _
    $region17: #{model_forward.1} parent=1 // pred_fallthru
      _
    // Predicated region
    $region18: #{model_forward.1} parent=1 // pred_check
      _
    $region19: #{model_forward.1} parent=1 // pred_check_branch
      %26 = sbr.rel (0) target = $region21
    $region20: #{model_forward.1} parent=1 // pred_region
      _
    $region21: #{model_forward.1} parent=1 // pred_fallthru
      _
    // Predicated region
    $region22: #{model_forward.1} parent=1 // pred_check
      _
    $region23: #{model_forward.1} parent=1 // pred_check_branch
      %28 = sbr.rel (0) target = $region25
    $region24: #{model_forward.1} parent=1 // pred_region
      _
    $region25: #{model_forward.1} parent=1 // pred_fallthru
      _
    // Predicated region
    $region26: #{model_forward.1} parent=1 // pred_check
      _
    $region27: #{model_forward.1} parent=1 // pred_check_branch
      %30 = sbr.rel (0) target = $region29
    $region28: #{model_forward.1} parent=1 // pred_region
      _
    $region29: #{model_forward.1} parent=1 // pred_fallthru
      _
    %p31 = scmp.eq.s32.totalorder 0, 0
    %p32 = scmp.eq.s32.totalorder 0, 0
    %p33 = pnand %p31, %p32
    %p34 = pneg %p33
    // Predicated region
    $region30: #{model_forward.1} parent=1 // pred_check
      _
    $region31: #{model_forward.1} parent=1 // pred_check_branch
      %36 = sbr.rel (%p33) target = $region33
    $region32: #{model_forward.1} parent=1 // pred_region
      %v37 = vld [vmem:[%s1] sm:$0x3]
      %vm38 = vcmask 254976
      %39 = vst.msk [vmem:[#allocation2] sm:$0x3] %vm38, %v37
      %v40 = vld [vmem:[%s2] sm:$0x3]
      %41 = vst.msk [vmem:[#allocation3] sm:$0x3] %vm38, %v40
    $region33: #{model_forward.1} parent=1 // pred_fallthru
      _
    // Predicated region
    $region34: #{model_forward.1} parent=1 // pred_check
      %p42 = pneg %p32
    $region35: #{model_forward.1} parent=1 // pred_check_branch
      %44 = sbr.rel (%p42) target = $region37
    $region36: #{model_forward.1} parent=1 // pred_region
      %v45 = vld [vmem:[%s3] sm:$0xff]
      %v46 = vld [vmem:[%s3 + $0x8] sm:$0xff]
      %v47 = vld [vmem:[%s3 + $0x10] sm:$0xff]
      %v48 = vld [vmem:[%s3 + $0x18] sm:$0xff]
      %v49 = vld [vmem:[%s3 + $0x20] sm:$0xff]
      %v50 = vld [vmem:[%s3 + $0x28] sm:$0xff]
      %v51 = vld [vmem:[%s3 + $0x30] sm:$0xff]
      %v52 = vld [vmem:[%s3 + $0x38] sm:$0xff]
      %v53 = vld [vmem:[%s4] sm:$0x1]
      %v54 = vld [vmem:[#allocation2] sm:$0x3]
      %v55 = vld [vmem:[#allocation3] sm:$0x3]
      %v56 = vld [vmem:[%s0] sm:$0x1]
      %v57 = vld [vmem:[%s0 + $0x8] sm:$0x1]
      %v60 = vrot.slane %v57, 7
      %vm61 = vcmask 1041409
      %v62 = vsel %vm61, %v60, %v56
      %65 = vrot.lane.b32.xlu0 %v54, 32
      %v66 = vpop.permute.xlu0 %65
      %vm68 = vcmask 261120
      %v69 = vsel %vm68, %v62, %v66
      %v71 = vlaneseq
      %v72 = vshrl.u32 %v71, 7
      %v73 = vsub.s32 0, %v72
      %v74 = vrot.slane %v53, %v73
      %vm76 = vcmask 523264
      %v78 = vsel %vm76, %v69, 0
      %80 = vmatprep.subr.mxu0 0.0
      %81 = vmatpush1.msra.mxu0 %v45
      %82 = vmatprep.subr.mxu0 0.0
      %83 = vmatpush1.msra.mxu0 %v46
      %84 = vmatprep.subr.mxu0 0.0
      %85 = vmatpush1.msra.mxu0 %v47
      %86 = vmatprep.subr.mxu0 0.0
      %87 = vmatpush1.msra.mxu0 %v48
      %88 = vmatprep.subr.mxu0 0.0
      %89 = vmatpush1.msra.mxu0 %v49
      %90 = vmatprep.subr.mxu0 0.0
      %91 = vmatpush1.msra.mxu0 %v50
      %92 = vmatprep.subr.mxu0 0.0
      %93 = vmatpush1.msra.mxu0 %v51
      %94 = vmatprep.subr.mxu0 0.0
      %95 = vmatpush1.msra.mxu0 %v52
      %96 = vmatprep.subr.mxu0 0.0
      %97 = vmatpush1.msra.mxu0 0.0
      %98 = vmatprep.subr.mxu0 0.0
      %99 = vmatpush1.msra.mxu0 0.0
      %100 = vmatprep.subr.mxu0 0.0
      %101 = vmatpush1.msra.mxu0 0.0
      %102 = vmatprep.subr.mxu0 0.0
      %103 = vmatpush1.msra.mxu0 0.0
      %104 = vmatprep.subr.mxu0 0.0
      %105 = vmatpush1.msra.mxu0 0.0
      %106 = vmatprep.subr.mxu0 0.0
      %107 = vmatpush1.msra.mxu0 0.0
      %108 = vmatprep.subr.mxu0 0.0
      %109 = vmatpush1.msra.mxu0 0.0
      %110 = vmatprep.subr.mxu0 0.0
      %111 = vmatpush1.msra.mxu0 0.0
      %112 = vmatprep.subr.mxu0 0.0
      %113 = vmatpush1.msra.mxu0 0.0
      %114 = vmatprep.subr.mxu0 0.0
      %115 = vmatpush1.msra.mxu0 0.0
      %116 = vmatprep.subr.mxu0 0.0
      %117 = vmatpush1.msra.mxu0 0.0
      %118 = vmatprep.subr.mxu0 0.0
      %119 = vmatpush1.msra.mxu0 0.0
      %120 = vmatprep.subr.mxu0 0.0
      %121 = vmatpush1.msra.mxu0 0.0
      %122 = vmatprep.subr.mxu0 0.0
      %123 = vmatpush1.msra.mxu0 0.0
      %124 = vmatprep.subr.mxu0 0.0
      %125 = vmatpush1.msra.mxu0 0.0
      %126 = vmatprep.subr.mxu0 0.0
      %127 = vmatpush1.msra.mxu0 0.0
      %128 = vmatprep.subr.mxu0 0.0
      %129 = vmatpush1.msra.mxu0 0.0
      %130 = vmatprep.subr.mxu0 0.0
      %131 = vmatpush1.msra.mxu0 0.0
      %132 = vmatprep.subr.mxu0 0.0
      %133 = vmatpush1.msra.mxu0 0.0
      %134 = vmatprep.subr.mxu0 0.0
      %135 = vmatpush1.msra.mxu0 0.0
      %136 = vmatprep.subr.mxu0 0.0
      %137 = vmatpush1.msra.mxu0 0.0
      %138 = vmatprep.subr.mxu0 0.0
      %139 = vmatpush1.msra.mxu0 0.0
      %140 = vmatprep.subr.mxu0 0.0
      %141 = vmatpush1.msra.mxu0 0.0
      %142 = vmatprep.subr.mxu0 0.0
      %143 = vmatpush1.msra.mxu0 0.0
      %144 = vmatprep.mubr.f32.mxu0 0.0
      %145 = vmatmul.mubr.f32.gmra.mrb[0].mxu0 %v78
      %v146 = vpop.f32.mrb[0].mxu0
      %v147 = vadd.f32 %v74, %v146
      %v148 = vpop.f32.mrb[0].mxu0
      %149 = vdwg.mxu0
      %v150 = vxor.u32 %v147, 2147483648
      %v151 = vmul.f32 %v150, 1.442695
      %v152 = vpow.pop %v151
      %v153 = vadd.f32 %v152, 1.0
      %v154 = vrcp.pop %v153
      %v155 = vmul.f32 1.0, %v154
      %v156 = vtanh.pop %v147
      %158 = vrot.lane.b32.xlu0 %v55, 32
      %v159 = vpop.permute.xlu0 %158
      %v161 = vmul.f32 %v155, %v159
      %163 = vrot.lane.b32.xlu0 %v156, 64
      %v164 = vpop.permute.xlu0 %163
      %v166 = vmul.f32 %v155, %v164
      %168 = vrot.lane.b32.xlu0 %v166, 32
      %v169 = vpop.permute.xlu0 %168
      %v171 = vadd.f32 %v161, %v169
      %v172 = vtanh.pop %v171
      %174 = vrot.lane.b32.xlu0 %v172, 64
      %v175 = vpop.permute.xlu0 %174
      %v177 = vmul.f32 %v155, %v175
      %v180 = vunpack.c.l.s4 1966171168
      %v181 = vunpack.c.0.s8 %v180
      %v182 = vlaneseq
      %v183 = vshrl.u32 %v182, 7
      %v184 = vsub.s32 %v181, %v183
      %v185 = vrot.slane %v177, %v184
      %v186 = vcombine.high %v185, %v185
      %v188 = vunpack.c.l.s4 1966171168
      %v189 = vunpack.c.0.s8 %v188
      %v190 = vlaneseq
      %v191 = vshrl.u32 %v190, 7
      %v192 = vsub.s32 %v189, %v191
      %v193 = vrot.slane %v185, %v192
      %v195 = vunpack.c.l.s4 1966171168
      %v196 = vunpack.c.0.s8 %v195
      %v197 = vlaneseq
      %v198 = vshrl.u32 %v197, 7
      %v199 = vsub.s32 %v196, %v198
      %v200 = vrot.slane %v186, %v199
      %v201 = vlaneseq
      %v202 = vshrl.u32 %v201, 7
      %v203 = vsub.s32 0, %v202
      %v204 = vrot.slane %v193, %v203
      %v205 = vlaneseq
      %v206 = vshrl.u32 %v205, 7
      %v207 = vsub.s32 0, %v206
      %v208 = vrot.slane %v200, %v207
      %209 = vrot.lane.b32.xlu0 %v204, 32
      %v210 = vpop.permute.xlu0 %209
      %211 = vrot.lane.b32.xlu0 %v208, 32
      %v212 = vpop.permute.xlu0 %211
      %vm215 = vcmask 253952
      %216 = vst.msk [vmem:[#allocation4] sm:$0x1] %vm215, %v210
      %217 = vst.msk [vmem:[#allocation4 + $0x8] sm:$0x1] %vm215, %v212
      %v218 = vld [vmem:[%s0 + $0x1] sm:$0x1]
      %v219 = vld [vmem:[%s0 + $0x9] sm:$0x1]
      %v222 = vrot.slane %v219, 7
      %v223 = vsel %vm61, %v222, %v218
      %225 = vrot.lane.b32.xlu0 %v177, 64
      %v226 = vpop.permute.xlu0 %225
      %v228 = vsel %vm68, %v223, %v226
      %v230 = vsel %vm76, %v228, 0
      %232 = vmatprep.subr.mxu0 0.0
      %233 = vmatpush1.msra.mxu0 %v45
      %234 = vmatprep.subr.mxu0 0.0
      %235 = vmatpush1.msra.mxu0 %v46
      %236 = vmatprep.subr.mxu0 0.0
      %237 = vmatpush1.msra.mxu0 %v47
      %238 = vmatprep.subr.mxu0 0.0
      %239 = vmatpush1.msra.mxu0 %v48
      %240 = vmatprep.subr.mxu0 0.0
      %241 = vmatpush1.msra.mxu0 %v49
      %242 = vmatprep.subr.mxu0 0.0
      %243 = vmatpush1.msra.mxu0 %v50
      %244 = vmatprep.subr.mxu0 0.0
      %245 = vmatpush1.msra.mxu0 %v51
      %246 = vmatprep.subr.mxu0 0.0
      %247 = vmatpush1.msra.mxu0 %v52
      %248 = vmatprep.subr.mxu0 0.0
      %249 = vmatpush1.msra.mxu0 0.0
      %250 = vmatprep.subr.mxu0 0.0
      %251 = vmatpush1.msra.mxu0 0.0
      %252 = vmatprep.subr.mxu0 0.0
      %253 = vmatpush1.msra.mxu0 0.0
      %254 = vmatprep.subr.mxu0 0.0
      %255 = vmatpush1.msra.mxu0 0.0
      %256 = vmatprep.subr.mxu0 0.0
      %257 = vmatpush1.msra.mxu0 0.0
      %258 = vmatprep.subr.mxu0 0.0
      %259 = vmatpush1.msra.mxu0 0.0
      %260 = vmatprep.subr.mxu0 0.0
      %261 = vmatpush1.msra.mxu0 0.0
      %262 = vmatprep.subr.mxu0 0.0
      %263 = vmatpush1.msra.mxu0 0.0
      %264 = vmatprep.subr.mxu0 0.0
      %265 = vmatpush1.msra.mxu0 0.0
      %266 = vmatprep.subr.mxu0 0.0
      %267 = vmatpush1.msra.mxu0 0.0
      %268 = vmatprep.subr.mxu0 0.0
      %269 = vmatpush1.msra.mxu0 0.0
      %270 = vmatprep.subr.mxu0 0.0
      %271 = vmatpush1.msra.mxu0 0.0
      %272 = vmatprep.subr.mxu0 0.0
      %273 = vmatpush1.msra.mxu0 0.0
      %274 = vmatprep.subr.mxu0 0.0
      %275 = vmatpush1.msra.mxu0 0.0
      %276 = vmatprep.subr.mxu0 0.0
      %277 = vmatpush1.msra.mxu0 0.0
      %278 = vmatprep.subr.mxu0 0.0
      %279 = vmatpush1.msra.mxu0 0.0
      %280 = vmatprep.subr.mxu0 0.0
      %281 = vmatpush1.msra.mxu0 0.0
      %282 = vmatprep.subr.mxu0 0.0
      %283 = vmatpush1.msra.mxu0 0.0
      %284 = vmatprep.subr.mxu0 0.0
      %285 = vmatpush1.msra.mxu0 0.0
      %286 = vmatprep.subr.mxu0 0.0
      %287 = vmatpush1.msra.mxu0 0.0
      %288 = vmatprep.subr.mxu0 0.0
      %289 = vmatpush1.msra.mxu0 0.0
      %290 = vmatprep.subr.mxu0 0.0
      %291 = vmatpush1.msra.mxu0 0.0
      %292 = vmatprep.subr.mxu0 0.0
      %293 = vmatpush1.msra.mxu0 0.0
      %294 = vmatprep.subr.mxu0 0.0
      %295 = vmatpush1.msra.mxu0 0.0
      %296 = vmatprep.mubr.f32.mxu0 0.0
      %297 = vmatmul.mubr.f32.gmra.mrb[0].mxu0 %v230
      %v298 = vpop.f32.mrb[0].mxu0
      %v299 = vadd.f32 %v74, %v298
      %v300 = vpop.f32.mrb[0].mxu0
      %301 = vdwg.mxu0
      %v302 = vxor.u32 %v299, 2147483648
      %v303 = vmul.f32 %v302, 1.442695
      %v304 = vpow.pop %v303
      %v305 = vadd.f32 %v304, 1.0
      %v306 = vrcp.pop %v305
      %v307 = vmul.f32 1.0, %v306
      %v308 = vtanh.pop %v299
      %v309 = vmul.f32 %v307, %v171
      %311 = vrot.lane.b32.xlu0 %v308, 64
      %v312 = vpop.permute.xlu0 %311
      %v314 = vmul.f32 %v307, %v312
      %316 = vrot.lane.b32.xlu0 %v314, 32
      %v317 = vpop.permute.xlu0 %316
      %v319 = vadd.f32 %v309, %v317
      %v320 = vtanh.pop %v319
      %322 = vrot.lane.b32.xlu0 %v320, 64
      %v323 = vpop.permute.xlu0 %322
      %v325 = vmul.f32 %v307, %v323
      %v328 = vunpack.c.l.s4 1966171168
      %v329 = vunpack.c.0.s8 %v328
      %v330 = vlaneseq
      %v331 = vshrl.u32 %v330, 7
      %v332 = vsub.s32 %v329, %v331
      %v333 = vrot.slane %v325, %v332
      %v334 = vcombine.high %v333, %v333
      %v336 = vunpack.c.l.s4 1966171168
      %v337 = vunpack.c.0.s8 %v336
      %v338 = vlaneseq
      %v339 = vshrl.u32 %v338, 7
      %v340 = vsub.s32 %v337, %v339
      %v341 = vrot.slane %v333, %v340
      %v343 = vunpack.c.l.s4 1966171168
      %v344 = vunpack.c.0.s8 %v343
      %v345 = vlaneseq
      %v346 = vshrl.u32 %v345, 7
      %v347 = vsub.s32 %v344, %v346
      %v348 = vrot.slane %v334, %v347
      %v349 = vlaneseq
      %v350 = vshrl.u32 %v349, 7
      %v351 = vsub.s32 0, %v350
      %v352 = vrot.slane %v341, %v351
      %v353 = vlaneseq
      %v354 = vshrl.u32 %v353, 7
      %v355 = vsub.s32 0, %v354
      %v356 = vrot.slane %v348, %v355
      %357 = vrot.lane.b32.xlu0 %v352, 32
      %v358 = vpop.permute.xlu0 %357
      %359 = vrot.lane.b32.xlu0 %v356, 32
      %v360 = vpop.permute.xlu0 %359
      %363 = vst.msk [vmem:[#allocation4 + $0x1] sm:$0x1] %vm215, %v358
      %364 = vst.msk [vmem:[#allocation4 + $0x9] sm:$0x1] %vm215, %v360
      %v365 = vld [vmem:[%s0 + $0x2] sm:$0x1]
      %v366 = vld [vmem:[%s0 + $0xa] sm:$0x1]
      %v369 = vrot.slane %v366, 7
      %v370 = vsel %vm61, %v369, %v365
      %372 = vrot.lane.b32.xlu0 %v325, 64
      %v373 = vpop.permute.xlu0 %372
      %v375 = vsel %vm68, %v370, %v373
      %v377 = vsel %vm76, %v375, 0
      %379 = vmatprep.subr.mxu0 0.0
      %380 = vmatpush1.msra.mxu0 %v45
      %381 = vmatprep.subr.mxu0 0.0
      %382 = vmatpush1.msra.mxu0 %v46
      %383 = vmatprep.subr.mxu0 0.0
      %384 = vmatpush1.msra.mxu0 %v47
      %385 = vmatprep.subr.mxu0 0.0
      %386 = vmatpush1.msra.mxu0 %v48
      %387 = vmatprep.subr.mxu0 0.0
      %388 = vmatpush1.msra.mxu0 %v49
      %389 = vmatprep.subr.mxu0 0.0
      %390 = vmatpush1.msra.mxu0 %v50
      %391 = vmatprep.subr.mxu0 0.0
      %392 = vmatpush1.msra.mxu0 %v51
      %393 = vmatprep.subr.mxu0 0.0
      %394 = vmatpush1.msra.mxu0 %v52
      %395 = vmatprep.subr.mxu0 0.0
      %396 = vmatpush1.msra.mxu0 0.0
      %397 = vmatprep.subr.mxu0 0.0
      %398 = vmatpush1.msra.mxu0 0.0
      %399 = vmatprep.subr.mxu0 0.0
      %400 = vmatpush1.msra.mxu0 0.0
      %401 = vmatprep.subr.mxu0 0.0
      %402 = vmatpush1.msra.mxu0 0.0
      %403 = vmatprep.subr.mxu0 0.0
      %404 = vmatpush1.msra.mxu0 0.0
      %405 = vmatprep.subr.mxu0 0.0
      %406 = vmatpush1.msra.mxu0 0.0
      %407 = vmatprep.subr.mxu0 0.0
      %408 = vmatpush1.msra.mxu0 0.0
      %409 = vmatprep.subr.mxu0 0.0
      %410 = vmatpush1.msra.mxu0 0.0
      %411 = vmatprep.subr.mxu0 0.0
      %412 = vmatpush1.msra.mxu0 0.0
      %413 = vmatprep.subr.mxu0 0.0
      %414 = vmatpush1.msra.mxu0 0.0
      %415 = vmatprep.subr.mxu0 0.0
      %416 = vmatpush1.msra.mxu0 0.0
      %417 = vmatprep.subr.mxu0 0.0
      %418 = vmatpush1.msra.mxu0 0.0
      %419 = vmatprep.subr.mxu0 0.0
      %420 = vmatpush1.msra.mxu0 0.0
      %421 = vmatprep.subr.mxu0 0.0
      %422 = vmatpush1.msra.mxu0 0.0
      %423 = vmatprep.subr.mxu0 0.0
      %424 = vmatpush1.msra.mxu0 0.0
      %425 = vmatprep.subr.mxu0 0.0
      %426 = vmatpush1.msra.mxu0 0.0
      %427 = vmatprep.subr.mxu0 0.0
      %428 = vmatpush1.msra.mxu0 0.0
      %429 = vmatprep.subr.mxu0 0.0
      %430 = vmatpush1.msra.mxu0 0.0
      %431 = vmatprep.subr.mxu0 0.0
      %432 = vmatpush1.msra.mxu0 0.0
      %433 = vmatprep.subr.mxu0 0.0
      %434 = vmatpush1.msra.mxu0 0.0
      %435 = vmatprep.subr.mxu0 0.0
      %436 = vmatpush1.msra.mxu0 0.0
      %437 = vmatprep.subr.mxu0 0.0
      %438 = vmatpush1.msra.mxu0 0.0
      %439 = vmatprep.subr.mxu0 0.0
      %440 = vmatpush1.msra.mxu0 0.0
      %441 = vmatprep.subr.mxu0 0.0
      %442 = vmatpush1.msra.mxu0 0.0
      %443 = vmatprep.mubr.f32.mxu0 0.0
      %444 = vmatmul.mubr.f32.gmra.mrb[0].mxu0 %v377
      %v445 = vpop.f32.mrb[0].mxu0
      %v446 = vadd.f32 %v74, %v445
      %v447 = vpop.f32.mrb[0].mxu0
      %448 = vdwg.mxu0
      %v449 = vxor.u32 %v446, 2147483648
      %v450 = vmul.f32 %v449, 1.442695
      %v451 = vpow.pop %v450
      %v452 = vadd.f32 %v451, 1.0
      %v453 = vrcp.pop %v452
      %v454 = vmul.f32 1.0, %v453
      %v455 = vtanh.pop %v446
      %v456 = vmul.f32 %v454, %v319
      %458 = vrot.lane.b32.xlu0 %v455, 64
      %v459 = vpop.permute.xlu0 %458
      %v461 = vmul.f32 %v454, %v459
      %463 = vrot.lane.b32.xlu0 %v461, 32
      %v464 = vpop.permute.xlu0 %463
      %v466 = vadd.f32 %v456, %v464
      %v467 = vtanh.pop %v466
      %469 = vrot.lane.b32.xlu0 %v467, 64
      %v470 = vpop.permute.xlu0 %469
      %v472 = vmul.f32 %v454, %v470
      %v475 = vunpack.c.l.s4 1966171168
      %v476 = vunpack.c.0.s8 %v475
      %v477 = vlaneseq
      %v478 = vshrl.u32 %v477, 7
      %v479 = vsub.s32 %v476, %v478
      %v480 = vrot.slane %v472, %v479
      %v481 = vcombine.high %v480, %v480
      %v483 = vunpack.c.l.s4 1966171168
      %v484 = vunpack.c.0.s8 %v483
      %v485 = vlaneseq
      %v486 = vshrl.u32 %v485, 7
      %v487 = vsub.s32 %v484, %v486
      %v488 = vrot.slane %v480, %v487
      %v490 = vunpack.c.l.s4 1966171168
      %v491 = vunpack.c.0.s8 %v490
      %v492 = vlaneseq
      %v493 = vshrl.u32 %v492, 7
      %v494 = vsub.s32 %v491, %v493
      %v495 = vrot.slane %v481, %v494
      %v496 = vlaneseq
      %v497 = vshrl.u32 %v496, 7
      %v498 = vsub.s32 0, %v497
      %v499 = vrot.slane %v488, %v498
      %v500 = vlaneseq
      %v501 = vshrl.u32 %v500, 7
      %v502 = vsub.s32 0, %v501
      %v503 = vrot.slane %v495, %v502
      %504 = vrot.lane.b32.xlu0 %v499, 32
      %v505 = vpop.permute.xlu0 %504
      %506 = vrot.lane.b32.xlu0 %v503, 32
      %v507 = vpop.permute.xlu0 %506
      %510 = vst.msk [vmem:[#allocation4 + $0x2] sm:$0x1] %vm215, %v505
      %511 = vst.msk [vmem:[#allocation4 + $0xa] sm:$0x1] %vm215, %v507
      %v512 = vld [vmem:[%s0 + $0x3] sm:$0x1]
      %v513 = vld [vmem:[%s0 + $0xb] sm:$0x1]
      %v516 = vrot.slane %v513, 7
      %v517 = vsel %vm61, %v516, %v512
      %519 = vrot.lane.b32.xlu0 %v472, 64
      %v520 = vpop.permute.xlu0 %519
      %v522 = vsel %vm68, %v517, %v520
      %v524 = vsel %vm76, %v522, 0
      %526 = vmatprep.subr.mxu0 0.0
      %527 = vmatpush1.msra.mxu0 %v45
      %528 = vmatprep.subr.mxu0 0.0
      %529 = vmatpush1.msra.mxu0 %v46
      %530 = vmatprep.subr.mxu0 0.0
      %531 = vmatpush1.msra.mxu0 %v47
      %532 = vmatprep.subr.mxu0 0.0
      %533 = vmatpush1.msra.mxu0 %v48
      %534 = vmatprep.subr.mxu0 0.0
      %535 = vmatpush1.msra.mxu0 %v49
      %536 = vmatprep.subr.mxu0 0.0
      %537 = vmatpush1.msra.mxu0 %v50
      %538 = vmatprep.subr.mxu0 0.0
      %539 = vmatpush1.msra.mxu0 %v51
      %540 = vmatprep.subr.mxu0 0.0
      %541 = vmatpush1.msra.mxu0 %v52
      %542 = vmatprep.subr.mxu0 0.0
      %543 = vmatpush1.msra.mxu0 0.0
      %544 = vmatprep.subr.mxu0 0.0
      %545 = vmatpush1.msra.mxu0 0.0
      %546 = vmatprep.subr.mxu0 0.0
      %547 = vmatpush1.msra.mxu0 0.0
      %548 = vmatprep.subr.mxu0 0.0
      %549 = vmatpush1.msra.mxu0 0.0
      %550 = vmatprep.subr.mxu0 0.0
      %551 = vmatpush1.msra.mxu0 0.0
      %552 = vmatprep.subr.mxu0 0.0
      %553 = vmatpush1.msra.mxu0 0.0
      %554 = vmatprep.subr.mxu0 0.0
      %555 = vmatpush1.msra.mxu0 0.0
      %556 = vmatprep.subr.mxu0 0.0
      %557 = vmatpush1.msra.mxu0 0.0
      %558 = vmatprep.subr.mxu0 0.0
      %559 = vmatpush1.msra.mxu0 0.0
      %560 = vmatprep.subr.mxu0 0.0
      %561 = vmatpush1.msra.mxu0 0.0
      %562 = vmatprep.subr.mxu0 0.0
      %563 = vmatpush1.msra.mxu0 0.0
      %564 = vmatprep.subr.mxu0 0.0
      %565 = vmatpush1.msra.mxu0 0.0
      %566 = vmatprep.subr.mxu0 0.0
      %567 = vmatpush1.msra.mxu0 0.0
      %568 = vmatprep.subr.mxu0 0.0
      %569 = vmatpush1.msra.mxu0 0.0
      %570 = vmatprep.subr.mxu0 0.0
      %571 = vmatpush1.msra.mxu0 0.0
      %572 = vmatprep.subr.mxu0 0.0
      %573 = vmatpush1.msra.mxu0 0.0
      %574 = vmatprep.subr.mxu0 0.0
      %575 = vmatpush1.msra.mxu0 0.0
      %576 = vmatprep.subr.mxu0 0.0
      %577 = vmatpush1.msra.mxu0 0.0
      %578 = vmatprep.subr.mxu0 0.0
      %579 = vmatpush1.msra.mxu0 0.0
      %580 = vmatprep.subr.mxu0 0.0
      %581 = vmatpush1.msra.mxu0 0.0
      %582 = vmatprep.subr.mxu0 0.0
      %583 = vmatpush1.msra.mxu0 0.0
      %584 = vmatprep.subr.mxu0 0.0
      %585 = vmatpush1.msra.mxu0 0.0
      %586 = vmatprep.subr.mxu0 0.0
      %587 = vmatpush1.msra.mxu0 0.0
      %588 = vmatprep.subr.mxu0 0.0
      %589 = vmatpush1.msra.mxu0 0.0
      %590 = vmatprep.mubr.f32.mxu0 0.0
      %591 = vmatmul.mubr.f32.gmra.mrb[0].mxu0 %v524
      %v592 = vpop.f32.mrb[0].mxu0
      %v593 = vadd.f32 %v74, %v592
      %v594 = vpop.f32.mrb[0].mxu0
      %595 = vdwg.mxu0
      %v596 = vxor.u32 %v593, 2147483648
      %v597 = vmul.f32 %v596, 1.442695
      %v598 = vpow.pop %v597
      %v599 = vadd.f32 %v598, 1.0
      %v600 = vrcp.pop %v599
      %v601 = vmul.f32 1.0, %v600
      %v602 = vtanh.pop %v593
      %v603 = vmul.f32 %v601, %v466
      %605 = vrot.lane.b32.xlu0 %v602, 64
      %v606 = vpop.permute.xlu0 %605
      %v608 = vmul.f32 %v601, %v606
      %610 = vrot.lane.b32.xlu0 %v608, 32
      %v611 = vpop.permute.xlu0 %610
      %v613 = vadd.f32 %v603, %v611
      %v614 = vtanh.pop %v613
      %616 = vrot.lane.b32.xlu0 %v614, 64
      %v617 = vpop.permute.xlu0 %616
      %v619 = vmul.f32 %v601, %v617
      %v622 = vunpack.c.l.s4 1966171168
      %v623 = vunpack.c.0.s8 %v622
      %v624 = vlaneseq
      %v625 = vshrl.u32 %v624, 7
      %v626 = vsub.s32 %v623, %v625
      %v627 = vrot.slane %v619, %v626
      %v628 = vcombine.high %v627, %v627
      %v630 = vunpack.c.l.s4 1966171168
      %v631 = vunpack.c.0.s8 %v630
      %v632 = vlaneseq
      %v633 = vshrl.u32 %v632, 7
      %v634 = vsub.s32 %v631, %v633
      %v635 = vrot.slane %v627, %v634
      %v637 = vunpack.c.l.s4 1966171168
      %v638 = vunpack.c.0.s8 %v637
      %v639 = vlaneseq
      %v640 = vshrl.u32 %v639, 7
      %v641 = vsub.s32 %v638, %v640
      %v642 = vrot.slane %v628, %v641
      %v643 = vlaneseq
      %v644 = vshrl.u32 %v643, 7
      %v645 = vsub.s32 0, %v644
      %v646 = vrot.slane %v635, %v645
      %v647 = vlaneseq
      %v648 = vshrl.u32 %v647, 7
      %v649 = vsub.s32 0, %v648
      %v650 = vrot.slane %v642, %v649
      %651 = vrot.lane.b32.xlu0 %v646, 32
      %v652 = vpop.permute.xlu0 %651
      %653 = vrot.lane.b32.xlu0 %v650, 32
      %v654 = vpop.permute.xlu0 %653
      %657 = vst.msk [vmem:[#allocation4 + $0x3] sm:$0x1] %vm215, %v652
      %658 = vst.msk [vmem:[#allocation4 + $0xb] sm:$0x1] %vm215, %v654
      %v659 = vld [vmem:[%s0 + $0x4] sm:$0x1]
      %v660 = vld [vmem:[%s0 + $0xc] sm:$0x1]
      %v663 = vrot.slane %v660, 7
      %v664 = vsel %vm61, %v663, %v659
      %666 = vrot.lane.b32.xlu0 %v619, 64
      %v667 = vpop.permute.xlu0 %666
      %v669 = vsel %vm68, %v664, %v667
      %v671 = vsel %vm76, %v669, 0
      %673 = vmatprep.subr.mxu0 0.0
      %674 = vmatpush1.msra.mxu0 %v45
      %675 = vmatprep.subr.mxu0 0.0
      %676 = vmatpush1.msra.mxu0 %v46
      %677 = vmatprep.subr.mxu0 0.0
      %678 = vmatpush1.msra.mxu0 %v47
      %679 = vmatprep.subr.mxu0 0.0
      %680 = vmatpush1.msra.mxu0 %v48
      %681 = vmatprep.subr.mxu0 0.0
      %682 = vmatpush1.msra.mxu0 %v49
      %683 = vmatprep.subr.mxu0 0.0
      %684 = vmatpush1.msra.mxu0 %v50
      %685 = vmatprep.subr.mxu0 0.0
      %686 = vmatpush1.msra.mxu0 %v51
      %687 = vmatprep.subr.mxu0 0.0
      %688 = vmatpush1.msra.mxu0 %v52
      %689 = vmatprep.subr.mxu0 0.0
      %690 = vmatpush1.msra.mxu0 0.0
      %691 = vmatprep.subr.mxu0 0.0
      %692 = vmatpush1.msra.mxu0 0.0
      %693 = vmatprep.subr.mxu0 0.0
      %694 = vmatpush1.msra.mxu0 0.0
      %695 = vmatprep.subr.mxu0 0.0
      %696 = vmatpush1.msra.mxu0 0.0
      %697 = vmatprep.subr.mxu0 0.0
      %698 = vmatpush1.msra.mxu0 0.0
      %699 = vmatprep.subr.mxu0 0.0
      %700 = vmatpush1.msra.mxu0 0.0
      %701 = vmatprep.subr.mxu0 0.0
      %702 = vmatpush1.msra.mxu0 0.0
      %703 = vmatprep.subr.mxu0 0.0
      %704 = vmatpush1.msra.mxu0 0.0
      %705 = vmatprep.subr.mxu0 0.0
      %706 = vmatpush1.msra.mxu0 0.0
      %707 = vmatprep.subr.mxu0 0.0
      %708 = vmatpush1.msra.mxu0 0.0
      %709 = vmatprep.subr.mxu0 0.0
      %710 = vmatpush1.msra.mxu0 0.0
      %711 = vmatprep.subr.mxu0 0.0
      %712 = vmatpush1.msra.mxu0 0.0
      %713 = vmatprep.subr.mxu0 0.0
      %714 = vmatpush1.msra.mxu0 0.0
      %715 = vmatprep.subr.mxu0 0.0
      %716 = vmatpush1.msra.mxu0 0.0
      %717 = vmatprep.subr.mxu0 0.0
      %718 = vmatpush1.msra.mxu0 0.0
      %719 = vmatprep.subr.mxu0 0.0
      %720 = vmatpush1.msra.mxu0 0.0
      %721 = vmatprep.subr.mxu0 0.0
      %722 = vmatpush1.msra.mxu0 0.0
      %723 = vmatprep.subr.mxu0 0.0
      %724 = vmatpush1.msra.mxu0 0.0
      %725 = vmatprep.subr.mxu0 0.0
      %726 = vmatpush1.msra.mxu0 0.0
      %727 = vmatprep.subr.mxu0 0.0
      %728 = vmatpush1.msra.mxu0 0.0
      %729 = vmatprep.subr.mxu0 0.0
      %730 = vmatpush1.msra.mxu0 0.0
      %731 = vmatprep.subr.mxu0 0.0
      %732 = vmatpush1.msra.mxu0 0.0
      %733 = vmatprep.subr.mxu0 0.0
      %734 = vmatpush1.msra.mxu0 0.0
      %735 = vmatprep.subr.mxu0 0.0
      %736 = vmatpush1.msra.mxu0 0.0
      %737 = vmatprep.mubr.f32.mxu0 0.0
      %738 = vmatmul.mubr.f32.gmra.mrb[0].mxu0 %v671
      %v739 = vpop.f32.mrb[0].mxu0
      %v740 = vadd.f32 %v74, %v739
      %v741 = vpop.f32.mrb[0].mxu0
      %742 = vdwg.mxu0
      %v743 = vxor.u32 %v740, 2147483648
      %v744 = vmul.f32 %v743, 1.442695
      %v745 = vpow.pop %v744
      %v746 = vadd.f32 %v745, 1.0
      %v747 = vrcp.pop %v746
      %v748 = vmul.f32 1.0, %v747
      %v749 = vtanh.pop %v740
      %v750 = vmul.f32 %v748, %v613
      %752 = vrot.lane.b32.xlu0 %v749, 64
      %v753 = vpop.permute.xlu0 %752
      %v755 = vmul.f32 %v748, %v753
      %757 = vrot.lane.b32.xlu0 %v755, 32
      %v758 = vpop.permute.xlu0 %757
      %v760 = vadd.f32 %v750, %v758
      %v761 = vtanh.pop %v760
      %763 = vrot.lane.b32.xlu0 %v761, 64
      %v764 = vpop.permute.xlu0 %763
      %v766 = vmul.f32 %v748, %v764
      %v769 = vunpack.c.l.s4 1966171168
      %v770 = vunpack.c.0.s8 %v769
      %v771 = vlaneseq
      %v772 = vshrl.u32 %v771, 7
      %v773 = vsub.s32 %v770, %v772
      %v774 = vrot.slane %v766, %v773
      %v775 = vcombine.high %v774, %v774
      %v777 = vunpack.c.l.s4 1966171168
      %v778 = vunpack.c.0.s8 %v777
      %v779 = vlaneseq
      %v780 = vshrl.u32 %v779, 7
      %v781 = vsub.s32 %v778, %v780
      %v782 = vrot.slane %v774, %v781
      %v784 = vunpack.c.l.s4 1966171168
      %v785 = vunpack.c.0.s8 %v784
      %v786 = vlaneseq
      %v787 = vshrl.u32 %v786, 7
      %v788 = vsub.s32 %v785, %v787
      %v789 = vrot.slane %v775, %v788
      %v790 = vlaneseq
      %v791 = vshrl.u32 %v790, 7
      %v792 = vsub.s32 0, %v791
      %v793 = vrot.slane %v782, %v792
      %v794 = vlaneseq
      %v795 = vshrl.u32 %v794, 7
      %v796 = vsub.s32 0, %v795
      %v797 = vrot.slane %v789, %v796
      %798 = vrot.lane.b32.xlu0 %v793, 32
      %v799 = vpop.permute.xlu0 %798
      %800 = vrot.lane.b32.xlu0 %v797, 32
      %v801 = vpop.permute.xlu0 %800
      %804 = vst.msk [vmem:[#allocation4 + $0x4] sm:$0x1] %vm215, %v799
      %805 = vst.msk [vmem:[#allocation4 + $0xc] sm:$0x1] %vm215, %v801
      %v806 = vld [vmem:[%s0 + $0x5] sm:$0x1]
      %v807 = vld [vmem:[%s0 + $0xd] sm:$0x1]
      %v810 = vrot.slane %v807, 7
      %v811 = vsel %vm61, %v810, %v806
      %813 = vrot.lane.b32.xlu0 %v766, 64
      %v814 = vpop.permute.xlu0 %813
      %v816 = vsel %vm68, %v811, %v814
      %v818 = vsel %vm76, %v816, 0
      %820 = vmatprep.subr.mxu0 0.0
      %821 = vmatpush1.msra.mxu0 %v45
      %822 = vmatprep.subr.mxu0 0.0
      %823 = vmatpush1.msra.mxu0 %v46
      %824 = vmatprep.subr.mxu0 0.0
      %825 = vmatpush1.msra.mxu0 %v47
      %826 = vmatprep.subr.mxu0 0.0
      %827 = vmatpush1.msra.mxu0 %v48
      %828 = vmatprep.subr.mxu0 0.0
      %829 = vmatpush1.msra.mxu0 %v49
      %830 = vmatprep.subr.mxu0 0.0
      %831 = vmatpush1.msra.mxu0 %v50
      %832 = vmatprep.subr.mxu0 0.0
      %833 = vmatpush1.msra.mxu0 %v51
      %834 = vmatprep.subr.mxu0 0.0
      %835 = vmatpush1.msra.mxu0 %v52
      %836 = vmatprep.subr.mxu0 0.0
      %837 = vmatpush1.msra.mxu0 0.0
      %838 = vmatprep.subr.mxu0 0.0
      %839 = vmatpush1.msra.mxu0 0.0
      %840 = vmatprep.subr.mxu0 0.0
      %841 = vmatpush1.msra.mxu0 0.0
      %842 = vmatprep.subr.mxu0 0.0
      %843 = vmatpush1.msra.mxu0 0.0
      %844 = vmatprep.subr.mxu0 0.0
      %845 = vmatpush1.msra.mxu0 0.0
      %846 = vmatprep.subr.mxu0 0.0
      %847 = vmatpush1.msra.mxu0 0.0
      %848 = vmatprep.subr.mxu0 0.0
      %849 = vmatpush1.msra.mxu0 0.0
      %850 = vmatprep.subr.mxu0 0.0
      %851 = vmatpush1.msra.mxu0 0.0
      %852 = vmatprep.subr.mxu0 0.0
      %853 = vmatpush1.msra.mxu0 0.0
      %854 = vmatprep.subr.mxu0 0.0
      %855 = vmatpush1.msra.mxu0 0.0
      %856 = vmatprep.subr.mxu0 0.0
      %857 = vmatpush1.msra.mxu0 0.0
      %858 = vmatprep.subr.mxu0 0.0
      %859 = vmatpush1.msra.mxu0 0.0
      %860 = vmatprep.subr.mxu0 0.0
      %861 = vmatpush1.msra.mxu0 0.0
      %862 = vmatprep.subr.mxu0 0.0
      %863 = vmatpush1.msra.mxu0 0.0
      %864 = vmatprep.subr.mxu0 0.0
      %865 = vmatpush1.msra.mxu0 0.0
      %866 = vmatprep.subr.mxu0 0.0
      %867 = vmatpush1.msra.mxu0 0.0
      %868 = vmatprep.subr.mxu0 0.0
      %869 = vmatpush1.msra.mxu0 0.0
      %870 = vmatprep.subr.mxu0 0.0
      %871 = vmatpush1.msra.mxu0 0.0
      %872 = vmatprep.subr.mxu0 0.0
      %873 = vmatpush1.msra.mxu0 0.0
      %874 = vmatprep.subr.mxu0 0.0
      %875 = vmatpush1.msra.mxu0 0.0
      %876 = vmatprep.subr.mxu0 0.0
      %877 = vmatpush1.msra.mxu0 0.0
      %878 = vmatprep.subr.mxu0 0.0
      %879 = vmatpush1.msra.mxu0 0.0
      %880 = vmatprep.subr.mxu0 0.0
      %881 = vmatpush1.msra.mxu0 0.0
      %882 = vmatprep.subr.mxu0 0.0
      %883 = vmatpush1.msra.mxu0 0.0
      %884 = vmatprep.mubr.f32.mxu0 0.0
      %885 = vmatmul.mubr.f32.gmra.mrb[0].mxu0 %v818
      %v886 = vpop.f32.mrb[0].mxu0
      %v887 = vadd.f32 %v74, %v886
      %v888 = vpop.f32.mrb[0].mxu0
      %889 = vdwg.mxu0
      %v890 = vxor.u32 %v887, 2147483648
      %v891 = vmul.f32 %v890, 1.442695
      %v892 = vpow.pop %v891
      %v893 = vadd.f32 %v892, 1.0
      %v894 = vrcp.pop %v893
      %v895 = vmul.f32 1.0, %v894
      %v896 = vtanh.pop %v887
      %v897 = vmul.f32 %v895, %v760
      %899 = vrot.lane.b32.xlu0 %v896, 64
      %v900 = vpop.permute.xlu0 %899
      %v902 = vmul.f32 %v895, %v900
      %904 = vrot.lane.b32.xlu0 %v902, 32
      %v905 = vpop.permute.xlu0 %904
      %v907 = vadd.f32 %v897, %v905
      %v908 = vtanh.pop %v907
      %910 = vrot.lane.b32.xlu0 %v908, 64
      %v911 = vpop.permute.xlu0 %910
      %v913 = vmul.f32 %v895, %v911
      %v916 = vunpack.c.l.s4 1966171168
      %v917 = vunpack.c.0.s8 %v916
      %v918 = vlaneseq
      %v919 = vshrl.u32 %v918, 7
      %v920 = vsub.s32 %v917, %v919
      %v921 = vrot.slane %v913, %v920
      %v922 = vcombine.high %v921, %v921
      %v924 = vunpack.c.l.s4 1966171168
      %v925 = vunpack.c.0.s8 %v924
      %v926 = vlaneseq
      %v927 = vshrl.u32 %v926, 7
      %v928 = vsub.s32 %v925, %v927
      %v929 = vrot.slane %v921, %v928
      %v931 = vunpack.c.l.s4 1966171168
      %v932 = vunpack.c.0.s8 %v931
      %v933 = vlaneseq
      %v934 = vshrl.u32 %v933, 7
      %v935 = vsub.s32 %v932, %v934
      %v936 = vrot.slane %v922, %v935
      %v937 = vlaneseq
      %v938 = vshrl.u32 %v937, 7
      %v939 = vsub.s32 0, %v938
      %v940 = vrot.slane %v929, %v939
      %v941 = vlaneseq
      %v942 = vshrl.u32 %v941, 7
      %v943 = vsub.s32 0, %v942
      %v944 = vrot.slane %v936, %v943
      %945 = vrot.lane.b32.xlu0 %v940, 32
      %v946 = vpop.permute.xlu0 %945
      %947 = vrot.lane.b32.xlu0 %v944, 32
      %v948 = vpop.permute.xlu0 %947
      %951 = vst.msk [vmem:[#allocation4 + $0x5] sm:$0x1] %vm215, %v946
      %952 = vst.msk [vmem:[#allocation4 + $0xd] sm:$0x1] %vm215, %v948
      %v953 = vld [vmem:[%s0 + $0x6] sm:$0x1]
      %v954 = vld [vmem:[%s0 + $0xe] sm:$0x1]
      %v957 = vrot.slane %v954, 7
      %v958 = vsel %vm61, %v957, %v953
      %960 = vrot.lane.b32.xlu0 %v913, 64
      %v961 = vpop.permute.xlu0 %960
      %v963 = vsel %vm68, %v958, %v961
      %v965 = vsel %vm76, %v963, 0
      %967 = vmatprep.subr.mxu0 0.0
      %968 = vmatpush1.msra.mxu0 %v45
      %969 = vmatprep.subr.mxu0 0.0
      %970 = vmatpush1.msra.mxu0 %v46
      %971 = vmatprep.subr.mxu0 0.0
      %972 = vmatpush1.msra.mxu0 %v47
      %973 = vmatprep.subr.mxu0 0.0
      %974 = vmatpush1.msra.mxu0 %v48
      %975 = vmatprep.subr.mxu0 0.0
      %976 = vmatpush1.msra.mxu0 %v49
      %977 = vmatprep.subr.mxu0 0.0
      %978 = vmatpush1.msra.mxu0 %v50
      %979 = vmatprep.subr.mxu0 0.0
      %980 = vmatpush1.msra.mxu0 %v51
      %981 = vmatprep.subr.mxu0 0.0
      %982 = vmatpush1.msra.mxu0 %v52
      %983 = vmatprep.subr.mxu0 0.0
      %984 = vmatpush1.msra.mxu0 0.0
      %985 = vmatprep.subr.mxu0 0.0
      %986 = vmatpush1.msra.mxu0 0.0
      %987 = vmatprep.subr.mxu0 0.0
      %988 = vmatpush1.msra.mxu0 0.0
      %989 = vmatprep.subr.mxu0 0.0
      %990 = vmatpush1.msra.mxu0 0.0
      %991 = vmatprep.subr.mxu0 0.0
      %992 = vmatpush1.msra.mxu0 0.0
      %993 = vmatprep.subr.mxu0 0.0
      %994 = vmatpush1.msra.mxu0 0.0
      %995 = vmatprep.subr.mxu0 0.0
      %996 = vmatpush1.msra.mxu0 0.0
      %997 = vmatprep.subr.mxu0 0.0
      %998 = vmatpush1.msra.mxu0 0.0
      %999 = vmatprep.subr.mxu0 0.0
      %1000 = vmatpush1.msra.mxu0 0.0
      %1001 = vmatprep.subr.mxu0 0.0
      %1002 = vmatpush1.msra.mxu0 0.0
      %1003 = vmatprep.subr.mxu0 0.0
      %1004 = vmatpush1.msra.mxu0 0.0
      %1005 = vmatprep.subr.mxu0 0.0
      %1006 = vmatpush1.msra.mxu0 0.0
      %1007 = vmatprep.subr.mxu0 0.0
      %1008 = vmatpush1.msra.mxu0 0.0
      %1009 = vmatprep.subr.mxu0 0.0
      %1010 = vmatpush1.msra.mxu0 0.0
      %1011 = vmatprep.subr.mxu0 0.0
      %1012 = vmatpush1.msra.mxu0 0.0
      %1013 = vmatprep.subr.mxu0 0.0
      %1014 = vmatpush1.msra.mxu0 0.0
      %1015 = vmatprep.subr.mxu0 0.0
      %1016 = vmatpush1.msra.mxu0 0.0
      %1017 = vmatprep.subr.mxu0 0.0
      %1018 = vmatpush1.msra.mxu0 0.0
      %1019 = vmatprep.subr.mxu0 0.0
      %1020 = vmatpush1.msra.mxu0 0.0
      %1021 = vmatprep.subr.mxu0 0.0
      %1022 = vmatpush1.msra.mxu0 0.0
      %1023 = vmatprep.subr.mxu0 0.0
      %1024 = vmatpush1.msra.mxu0 0.0
      %1025 = vmatprep.subr.mxu0 0.0
      %1026 = vmatpush1.msra.mxu0 0.0
      %1027 = vmatprep.subr.mxu0 0.0
      %1028 = vmatpush1.msra.mxu0 0.0
      %1029 = vmatprep.subr.mxu0 0.0
      %1030 = vmatpush1.msra.mxu0 0.0
      %1031 = vmatprep.mubr.f32.mxu0 0.0
      %1032 = vmatmul.mubr.f32.gmra.mrb[0].mxu0 %v965
      %v1033 = vpop.f32.mrb[0].mxu0
      %v1034 = vadd.f32 %v74, %v1033
      %v1035 = vpop.f32.mrb[0].mxu0
      %1036 = vdwg.mxu0
      %v1037 = vxor.u32 %v1034, 2147483648
      %v1038 = vmul.f32 %v1037, 1.442695
      %v1039 = vpow.pop %v1038
      %v1040 = vadd.f32 %v1039, 1.0
      %v1041 = vrcp.pop %v1040
      %v1042 = vmul.f32 1.0, %v1041
      %v1043 = vtanh.pop %v1034
      %v1044 = vmul.f32 %v1042, %v907
      %1046 = vrot.lane.b32.xlu0 %v1043, 64
      %v1047 = vpop.permute.xlu0 %1046
      %v1049 = vmul.f32 %v1042, %v1047
      %1051 = vrot.lane.b32.xlu0 %v1049, 32
      %v1052 = vpop.permute.xlu0 %1051
      %v1054 = vadd.f32 %v1044, %v1052
      %v1055 = vtanh.pop %v1054
      %1057 = vrot.lane.b32.xlu0 %v1055, 64
      %v1058 = vpop.permute.xlu0 %1057
      %v1060 = vmul.f32 %v1042, %v1058
      %v1063 = vunpack.c.l.s4 1966171168
      %v1064 = vunpack.c.0.s8 %v1063
      %v1065 = vlaneseq
      %v1066 = vshrl.u32 %v1065, 7
      %v1067 = vsub.s32 %v1064, %v1066
      %v1068 = vrot.slane %v1060, %v1067
      %v1069 = vcombine.high %v1068, %v1068
      %v1071 = vunpack.c.l.s4 1966171168
      %v1072 = vunpack.c.0.s8 %v1071
      %v1073 = vlaneseq
      %v1074 = vshrl.u32 %v1073, 7
      %v1075 = vsub.s32 %v1072, %v1074
      %v1076 = vrot.slane %v1068, %v1075
      %v1078 = vunpack.c.l.s4 1966171168
      %v1079 = vunpack.c.0.s8 %v1078
      %v1080 = vlaneseq
      %v1081 = vshrl.u32 %v1080, 7
      %v1082 = vsub.s32 %v1079, %v1081
      %v1083 = vrot.slane %v1069, %v1082
      %v1084 = vlaneseq
      %v1085 = vshrl.u32 %v1084, 7
      %v1086 = vsub.s32 0, %v1085
      %v1087 = vrot.slane %v1076, %v1086
      %v1088 = vlaneseq
      %v1089 = vshrl.u32 %v1088, 7
      %v1090 = vsub.s32 0, %v1089
      %v1091 = vrot.slane %v1083, %v1090
      %1092 = vrot.lane.b32.xlu0 %v1087, 32
      %v1093 = vpop.permute.xlu0 %1092
      %1094 = vrot.lane.b32.xlu0 %v1091, 32
      %v1095 = vpop.permute.xlu0 %1094
      %1098 = vst.msk [vmem:[#allocation4 + $0x6] sm:$0x1] %vm215, %v1093
      %1099 = vst.msk [vmem:[#allocation4 + $0xe] sm:$0x1] %vm215, %v1095
      %v1100 = vld [vmem:[%s0 + $0x7] sm:$0x1]
      %v1101 = vld [vmem:[%s0 + $0xf] sm:$0x1]
      %v1104 = vrot.slane %v1101, 7
      %v1105 = vsel %vm61, %v1104, %v1100
      %1107 = vrot.lane.b32.xlu0 %v1060, 64
      %v1108 = vpop.permute.xlu0 %1107
      %v1110 = vsel %vm68, %v1105, %v1108
      %v1112 = vsel %vm76, %v1110, 0
      %1114 = vmatprep.subr.mxu0 0.0
      %1115 = vmatpush1.msra.mxu0 %v45
      %1116 = vmatprep.subr.mxu0 0.0
      %1117 = vmatpush1.msra.mxu0 %v46
      %1118 = vmatprep.subr.mxu0 0.0
      %1119 = vmatpush1.msra.mxu0 %v47
      %1120 = vmatprep.subr.mxu0 0.0
      %1121 = vmatpush1.msra.mxu0 %v48
      %1122 = vmatprep.subr.mxu0 0.0
      %1123 = vmatpush1.msra.mxu0 %v49
      %1124 = vmatprep.subr.mxu0 0.0
      %1125 = vmatpush1.msra.mxu0 %v50
      %1126 = vmatprep.subr.mxu0 0.0
      %1127 = vmatpush1.msra.mxu0 %v51
      %1128 = vmatprep.subr.mxu0 0.0
      %1129 = vmatpush1.msra.mxu0 %v52
      %1130 = vmatprep.subr.mxu0 0.0
      %1131 = vmatpush1.msra.mxu0 0.0
      %1132 = vmatprep.subr.mxu0 0.0
      %1133 = vmatpush1.msra.mxu0 0.0
      %1134 = vmatprep.subr.mxu0 0.0
      %1135 = vmatpush1.msra.mxu0 0.0
      %1136 = vmatprep.subr.mxu0 0.0
      %1137 = vmatpush1.msra.mxu0 0.0
      %1138 = vmatprep.subr.mxu0 0.0
      %1139 = vmatpush1.msra.mxu0 0.0
      %1140 = vmatprep.subr.mxu0 0.0
      %1141 = vmatpush1.msra.mxu0 0.0
      %1142 = vmatprep.subr.mxu0 0.0
      %1143 = vmatpush1.msra.mxu0 0.0
      %1144 = vmatprep.subr.mxu0 0.0
      %1145 = vmatpush1.msra.mxu0 0.0
      %1146 = vmatprep.subr.mxu0 0.0
      %1147 = vmatpush1.msra.mxu0 0.0
      %1148 = vmatprep.subr.mxu0 0.0
      %1149 = vmatpush1.msra.mxu0 0.0
      %1150 = vmatprep.subr.mxu0 0.0
      %1151 = vmatpush1.msra.mxu0 0.0
      %1152 = vmatprep.subr.mxu0 0.0
      %1153 = vmatpush1.msra.mxu0 0.0
      %1154 = vmatprep.subr.mxu0 0.0
      %1155 = vmatpush1.msra.mxu0 0.0
      %1156 = vmatprep.subr.mxu0 0.0
      %1157 = vmatpush1.msra.mxu0 0.0
      %1158 = vmatprep.subr.mxu0 0.0
      %1159 = vmatpush1.msra.mxu0 0.0
      %1160 = vmatprep.subr.mxu0 0.0
      %1161 = vmatpush1.msra.mxu0 0.0
      %1162 = vmatprep.subr.mxu0 0.0
      %1163 = vmatpush1.msra.mxu0 0.0
      %1164 = vmatprep.subr.mxu0 0.0
      %1165 = vmatpush1.msra.mxu0 0.0
      %1166 = vmatprep.subr.mxu0 0.0
      %1167 = vmatpush1.msra.mxu0 0.0
      %1168 = vmatprep.subr.mxu0 0.0
      %1169 = vmatpush1.msra.mxu0 0.0
      %1170 = vmatprep.subr.mxu0 0.0
      %1171 = vmatpush1.msra.mxu0 0.0
      %1172 = vmatprep.subr.mxu0 0.0
      %1173 = vmatpush1.msra.mxu0 0.0
      %1174 = vmatprep.subr.mxu0 0.0
      %1175 = vmatpush1.msra.mxu0 0.0
      %1176 = vmatprep.subr.mxu0 0.0
      %1177 = vmatpush1.msra.mxu0 0.0
      %1178 = vmatprep.mubr.f32.mxu0 0.0
      %1179 = vmatmul.mubr.f32.gmra.mrb[0].mxu0 %v1112
      %v1180 = vpop.f32.mrb[0].mxu0
      %v1181 = vadd.f32 %v74, %v1180
      %v1182 = vpop.f32.mrb[0].mxu0
      %1183 = vdwg.mxu0
      %v1184 = vxor.u32 %v1181, 2147483648
      %v1185 = vmul.f32 %v1184, 1.442695
      %v1186 = vpow.pop %v1185
      %v1187 = vadd.f32 %v1186, 1.0
      %v1188 = vrcp.pop %v1187
      %v1189 = vmul.f32 1.0, %v1188
      %v1190 = vtanh.pop %v1181
      %v1191 = vmul.f32 %v1189, %v1054
      %1193 = vrot.lane.b32.xlu0 %v1190, 64
      %v1194 = vpop.permute.xlu0 %1193
      %v1196 = vmul.f32 %v1189, %v1194
      %1198 = vrot.lane.b32.xlu0 %v1196, 32
      %v1199 = vpop.permute.xlu0 %1198
      %v1201 = vadd.f32 %v1191, %v1199
      %v1202 = vtanh.pop %v1201
      %1204 = vrot.lane.b32.xlu0 %v1202, 64
      %v1205 = vpop.permute.xlu0 %1204
      %v1207 = vmul.f32 %v1189, %v1205
      %v1210 = vunpack.c.l.s4 1966171168
      %v1211 = vunpack.c.0.s8 %v1210
      %v1212 = vlaneseq
      %v1213 = vshrl.u32 %v1212, 7
      %v1214 = vsub.s32 %v1211, %v1213
      %v1215 = vrot.slane %v1207, %v1214
      %v1216 = vcombine.high %v1215, %v1215
      %v1218 = vunpack.c.l.s4 1966171168
      %v1219 = vunpack.c.0.s8 %v1218
      %v1220 = vlaneseq
      %v1221 = vshrl.u32 %v1220, 7
      %v1222 = vsub.s32 %v1219, %v1221
      %v1223 = vrot.slane %v1215, %v1222
      %v1225 = vunpack.c.l.s4 1966171168
      %v1226 = vunpack.c.0.s8 %v1225
      %v1227 = vlaneseq
      %v1228 = vshrl.u32 %v1227, 7
      %v1229 = vsub.s32 %v1226, %v1228
      %v1230 = vrot.slane %v1216, %v1229
      %v1231 = vlaneseq
      %v1232 = vshrl.u32 %v1231, 7
      %v1233 = vsub.s32 0, %v1232
      %v1234 = vrot.slane %v1223, %v1233
      %v1235 = vlaneseq
      %v1236 = vshrl.u32 %v1235, 7
      %v1237 = vsub.s32 0, %v1236
      %v1238 = vrot.slane %v1230, %v1237
      %1239 = vrot.lane.b32.xlu0 %v1234, 32
      %v1240 = vpop.permute.xlu0 %1239
      %1241 = vrot.lane.b32.xlu0 %v1238, 32
      %v1242 = vpop.permute.xlu0 %1241
      %1245 = vst.msk [vmem:[#allocation4 + $0x7] sm:$0x1] %vm215, %v1240
      %1246 = vst.msk [vmem:[#allocation4 + $0xf] sm:$0x1] %vm215, %v1242
      %1247 = vrot.lane.b32.xlu0 %v1207, 32
      %v1248 = vpop.permute.xlu0 %1247
      %vm1250 = vcmask 254976
      %1251 = vst.msk [vmem:[#allocation2] sm:$0x3] %vm1250, %v1248
      %1253 = vrot.lane.b32.xlu0 %v1201, 96
      %v1254 = vpop.permute.xlu0 %1253
      %1256 = vst.msk [vmem:[#allocation3] sm:$0x3] %vm1250, %v1254
    $region37: #{model_forward.1} parent=1 // pred_fallthru
      _
    %v1257 = vld [vmem:[%s5] sm:$0xff]
    %v1258 = vld [vmem:[%s5 + $0x8] sm:$0xff]
    %v1259 = vld [vmem:[%s5 + $0x10] sm:$0xff]
    %v1260 = vld [vmem:[%s5 + $0x18] sm:$0xff]
    %v1261 = vld [vmem:[%s6] sm:$0x1]
    %v1262 = vld [vmem:[#allocation4] sm:$0xff]
    %v1264 = vlaneseq
    %v1265 = vshrl.u32 %v1264, 7
    %v1266 = vsub.s32 0, %v1265
    %v1267 = vrot.slane %v1261, %v1266
    %vm1269 = vcmask 261120
    %v1271 = vsel %vm1269, %v1262, 0
    %1273 = vmatprep.subr.mxu0 0.0
    %1274 = vmatpush1.msra.mxu0 %v1257
    %1275 = vmatprep.subr.mxu0 0.0
    %1276 = vmatpush1.msra.mxu0 %v1258
    %1277 = vmatprep.subr.mxu0 0.0
    %1278 = vmatpush1.msra.mxu0 %v1259
    %1279 = vmatprep.subr.mxu0 0.0
    %1280 = vmatpush1.msra.mxu0 %v1260
    %1281 = vmatprep.subr.mxu0 0.0
    %1282 = vmatpush1.msra.mxu0 0.0
    %1283 = vmatprep.subr.mxu0 0.0
    %1284 = vmatpush1.msra.mxu0 0.0
    %1285 = vmatprep.subr.mxu0 0.0
    %1286 = vmatpush1.msra.mxu0 0.0
    %1287 = vmatprep.subr.mxu0 0.0
    %1288 = vmatpush1.msra.mxu0 0.0
    %1289 = vmatprep.subr.mxu0 0.0
    %1290 = vmatpush1.msra.mxu0 0.0
    %1291 = vmatprep.subr.mxu0 0.0
    %1292 = vmatpush1.msra.mxu0 0.0
    %1293 = vmatprep.subr.mxu0 0.0
    %1294 = vmatpush1.msra.mxu0 0.0
    %1295 = vmatprep.subr.mxu0 0.0
    %1296 = vmatpush1.msra.mxu0 0.0
    %1297 = vmatprep.subr.mxu0 0.0
    %1298 = vmatpush1.msra.mxu0 0.0
    %1299 = vmatprep.subr.mxu0 0.0
    %1300 = vmatpush1.msra.mxu0 0.0
    %1301 = vmatprep.subr.mxu0 0.0
    %1302 = vmatpush1.msra.mxu0 0.0
    %1303 = vmatprep.subr.mxu0 0.0
    %1304 = vmatpush1.msra.mxu0 0.0
    %1305 = vmatprep.subr.mxu0 0.0
    %1306 = vmatpush1.msra.mxu0 0.0
    %1307 = vmatprep.subr.mxu0 0.0
    %1308 = vmatpush1.msra.mxu0 0.0
    %1309 = vmatprep.subr.mxu0 0.0
    %1310 = vmatpush1.msra.mxu0 0.0
    %1311 = vmatprep.subr.mxu0 0.0
    %1312 = vmatpush1.msra.mxu0 0.0
    %1313 = vmatprep.subr.mxu0 0.0
    %1314 = vmatpush1.msra.mxu0 0.0
    %1315 = vmatprep.subr.mxu0 0.0
    %1316 = vmatpush1.msra.mxu0 0.0
    %1317 = vmatprep.subr.mxu0 0.0
    %1318 = vmatpush1.msra.mxu0 0.0
    %1319 = vmatprep.subr.mxu0 0.0
    %1320 = vmatpush1.msra.mxu0 0.0
    %1321 = vmatprep.subr.mxu0 0.0
    %1322 = vmatpush1.msra.mxu0 0.0
    %1323 = vmatprep.subr.mxu0 0.0
    %1324 = vmatpush1.msra.mxu0 0.0
    %1325 = vmatprep.subr.mxu0 0.0
    %1326 = vmatpush1.msra.mxu0 0.0
    %1327 = vmatprep.subr.mxu0 0.0
    %1328 = vmatpush1.msra.mxu0 0.0
    %1329 = vmatprep.subr.mxu0 0.0
    %1330 = vmatpush1.msra.mxu0 0.0
    %1331 = vmatprep.subr.mxu0 0.0
    %1332 = vmatpush1.msra.mxu0 0.0
    %1333 = vmatprep.subr.mxu0 0.0
    %1334 = vmatpush1.msra.mxu0 0.0
    %1335 = vmatprep.subr.mxu0 0.0
    %1336 = vmatpush1.msra.mxu0 0.0
    %1337 = vmatprep.mubr.f32.mxu0 0.0
    %1338 = vmatmul.mubr.f32.gmra.mrb[0].mxu0 %v1271
    %v1339 = vpop.f32.mrb[0].mxu0
    %v1340 = vadd.f32 %v1267, %v1339
    %v1341 = vpop.f32.mrb[0].mxu0
    %1342 = vdwg.mxu0
    %1343 = vst.msk [vmem:[#allocation5] sm:$0xff] %vm1269, %v1340
    %s1344 = scalar_lea.vmem [#allocation4], 8
    %v1345 = vld [vmem:[%s1344] sm:$0xff]
    %v1347 = vsel %vm1269, %v1345, 0
    %1349 = vmatprep.subr.mxu0 0.0
    %1350 = vmatpush1.msra.mxu0 %v1257
    %1351 = vmatprep.subr.mxu0 0.0
    %1352 = vmatpush1.msra.mxu0 %v1258
    %1353 = vmatprep.subr.mxu0 0.0
    %1354 = vmatpush1.msra.mxu0 %v1259
    %1355 = vmatprep.subr.mxu0 0.0
    %1356 = vmatpush1.msra.mxu0 %v1260
    %1357 = vmatprep.subr.mxu0 0.0
    %1358 = vmatpush1.msra.mxu0 0.0
    %1359 = vmatprep.subr.mxu0 0.0
    %1360 = vmatpush1.msra.mxu0 0.0
    %1361 = vmatprep.subr.mxu0 0.0
    %1362 = vmatpush1.msra.mxu0 0.0
    %1363 = vmatprep.subr.mxu0 0.0
    %1364 = vmatpush1.msra.mxu0 0.0
    %1365 = vmatprep.subr.mxu0 0.0
    %1366 = vmatpush1.msra.mxu0 0.0
    %1367 = vmatprep.subr.mxu0 0.0
    %1368 = vmatpush1.msra.mxu0 0.0
    %1369 = vmatprep.subr.mxu0 0.0
    %1370 = vmatpush1.msra.mxu0 0.0
    %1371 = vmatprep.subr.mxu0 0.0
    %1372 = vmatpush1.msra.mxu0 0.0
    %1373 = vmatprep.subr.mxu0 0.0
    %1374 = vmatpush1.msra.mxu0 0.0
    %1375 = vmatprep.subr.mxu0 0.0
    %1376 = vmatpush1.msra.mxu0 0.0
    %1377 = vmatprep.subr.mxu0 0.0
    %1378 = vmatpush1.msra.mxu0 0.0
    %1379 = vmatprep.subr.mxu0 0.0
    %1380 = vmatpush1.msra.mxu0 0.0
    %1381 = vmatprep.subr.mxu0 0.0
    %1382 = vmatpush1.msra.mxu0 0.0
    %1383 = vmatprep.subr.mxu0 0.0
    %1384 = vmatpush1.msra.mxu0 0.0
    %1385 = vmatprep.subr.mxu0 0.0
    %1386 = vmatpush1.msra.mxu0 0.0
    %1387 = vmatprep.subr.mxu0 0.0
    %1388 = vmatpush1.msra.mxu0 0.0
    %1389 = vmatprep.subr.mxu0 0.0
    %1390 = vmatpush1.msra.mxu0 0.0
    %1391 = vmatprep.subr.mxu0 0.0
    %1392 = vmatpush1.msra.mxu0 0.0
    %1393 = vmatprep.subr.mxu0 0.0
    %1394 = vmatpush1.msra.mxu0 0.0
    %1395 = vmatprep.subr.mxu0 0.0
    %1396 = vmatpush1.msra.mxu0 0.0
    %1397 = vmatprep.subr.mxu0 0.0
    %1398 = vmatpush1.msra.mxu0 0.0
    %1399 = vmatprep.subr.mxu0 0.0
    %1400 = vmatpush1.msra.mxu0 0.0
    %1401 = vmatprep.subr.mxu0 0.0
    %1402 = vmatpush1.msra.mxu0 0.0
    %1403 = vmatprep.subr.mxu0 0.0
    %1404 = vmatpush1.msra.mxu0 0.0
    %1405 = vmatprep.subr.mxu0 0.0
    %1406 = vmatpush1.msra.mxu0 0.0
    %1407 = vmatprep.subr.mxu0 0.0
    %1408 = vmatpush1.msra.mxu0 0.0
    %1409 = vmatprep.subr.mxu0 0.0
    %1410 = vmatpush1.msra.mxu0 0.0
    %1411 = vmatprep.subr.mxu0 0.0
    %1412 = vmatpush1.msra.mxu0 0.0
    %1413 = vmatprep.mubr.f32.mxu0 0.0
    %1414 = vmatmul.mubr.f32.gmra.mrb[0].mxu0 %v1347
    %v1415 = vpop.f32.mrb[0].mxu0
    %v1416 = vadd.f32 %v1267, %v1415
    %v1417 = vpop.f32.mrb[0].mxu0
    %1418 = vdwg.mxu0
    %s1419 = scalar_lea.vmem [#allocation5], 8
    %1420 = vst.msk [vmem:[%s1419] sm:$0xff] %vm1269, %v1416
    // Predicated region
    $region38: #{model_forward.1} parent=1 // pred_check
      _
    $region39: #{model_forward.1} parent=1 // pred_check_branch
      %1422 = sbr.rel (%p33) target = $region41
    $region40: #{model_forward.1} parent=1 // pred_region
      %v1423 = vld [vmem:[#allocation2] sm:$0x3]
      %vm1424 = vcmask 254976
      %1425 = vst.msk [vmem:[#allocation7] sm:$0x3] %vm1424, %v1423
      %v1426 = vld [vmem:[#allocation3] sm:$0x3]
      %1427 = vst.msk [vmem:[#allocation9] sm:$0x3] %vm1424, %v1426
    $region41: #{model_forward.1} parent=1 // pred_fallthru
      _
    // Predicated region
    $region42: #{model_forward.1} parent=1 // pred_check
      _
    $region43: #{model_forward.1} parent=1 // pred_check_branch
      %1429 = sbr.rel (0) target = $region45
    $region44: #{model_forward.1} parent=1 // pred_region
      %s1431 = ssub.s32 256, 256
      %1432 = vsyncadd [#allocation6], %s1431
      %s1433 = sshll.u32 [#allocation5], 4
      %s1434 = int_to_ptr.vmem [resolvable:$true] %s1433
      %1439 = dma.vmem_to_hbm [thread:$0]  %s1434, 256, %s7, [#allocation6], 128, 128, 8
    $region45: #{model_forward.1} parent=1 // pred_fallthru
      _
    // Predicated region
    $region46: #{model_forward.1} parent=1 // pred_check
      _
    $region47: #{model_forward.1} parent=1 // pred_check_branch
      %1441 = sbr.rel (0) target = $region49
    $region48: #{model_forward.1} parent=1 // pred_region
      %s1443 = ssub.s32 32, 32
      %1444 = vsyncadd [#allocation8], %s1443
      %s1446 = sshll.u32 [#allocation7], 4
      %s1447 = int_to_ptr.vmem [resolvable:$true] %s1446
      %1449 = dma.vmem_to_hbm [thread:$0]  %s1447, 32, %s8, [#allocation8]
    $region49: #{model_forward.1} parent=1 // pred_fallthru
      _
    // Predicated region
    $region50: #{model_forward.1} parent=1 // pred_check
      _
    $region51: #{model_forward.1} parent=1 // pred_check_branch
      %1451 = sbr.rel (0) target = $region53
    $region52: #{model_forward.1} parent=1 // pred_region
      %s1453 = ssub.s32 32, 32
      %1454 = vsyncadd [#allocation8], %s1453
      %s1456 = sshll.u32 [#allocation9], 4
      %s1457 = int_to_ptr.vmem [resolvable:$true] %s1456
      %1459 = dma.vmem_to_hbm [thread:$0]  %s1457, 32, %s9, [#allocation8]
    $region53: #{model_forward.1} parent=1 // pred_fallthru
      _
    // Predicated region
    $region54: #{model_forward.1} parent=1 // pred_check
      _
    $region55: #{model_forward.1} parent=1 // pred_check_branch
      %1461 = sbr.rel (0) target = $region57
    $region56: #{model_forward.1} parent=1 // pred_region
      %1462 = dma.done [#allocation6], 256
    $region57: #{model_forward.1} parent=1 // pred_fallthru
      _
    // Predicated region
    $region58: #{model_forward.1} parent=1 // pred_check
      _
    $region59: #{model_forward.1} parent=1 // pred_check_branch
      %1464 = sbr.rel (0) target = $region61
    $region60: #{model_forward.1} parent=1 // pred_region
      %1465 = dma.done [#allocation8], 32
    $region61: #{model_forward.1} parent=1 // pred_fallthru
      _
    // Predicated region
    $region62: #{model_forward.1} parent=1 // pred_check
      _
    $region63: #{model_forward.1} parent=1 // pred_check_branch
      %1467 = sbr.rel (0) target = $region65
    $region64: #{model_forward.1} parent=1 // pred_region
      %1468 = dma.done [#allocation8], 32
    $region65: #{model_forward.1} parent=1 // pred_fallthru
      _
    %1469 = vsyncpa [#allocation6], 1
    %1470 = vsyncpa [#allocation8], 1

</llo_original>
